<compile_context>
chip_gen: v7x
topology: tpu7x:2x2x1
jax: 0.10.0
libtpu: 0.0.40
codegen_flags: <defaults>
</compile_context>

<pallas_src>
import functools

import numpy as np

import jax
import jax.numpy as jnp
from jax.experimental import pallas as pl
from jax.experimental.pallas import tpu as pltpu


def _eff_attn_kernel(x_ref, wqkv_ref, wr_ref, br_ref, mask_ref, o_ref, agg_ref,
                     *, head_count):
    # x_ref:    [Bt, N, C]  bf16 activations (batch tile)
    # wqkv_ref: [C, 3C]     bf16, already transposed + fused (Wq.T | Wk.T | Wv.T)
    # wr_ref:   [C, C]      bf16, already transposed (Wr.T)
    # br_ref:   [1, C]      f32 reprojection bias
    # mask_ref: [C, C]      f32 block-diagonal head mask
    # o_ref:    [Bt, N, C]  output block
    # agg_ref:  [Bt*N, C]   bf16 VMEM scratch for the concatenated attended values
    Bt, N, C = x_ref.shape
    H = head_count
    hk = C // H
    M = Bt * N

    # ---- Fused QKV projection: one bf16 MXU pass over all Bt*N rows, f32 accumulate.
    x2 = x_ref[...].reshape(M, C)
    qkv = jnp.dot(x2, wqkv_ref[...], preferred_element_type=jnp.float32)   # [M, 3C] f32
    q = qkv[:, :C]
    k = qkv[:, C:2 * C].reshape(Bt, N, C)
    v = qkv[:, 2 * C:].reshape(Bt, N, C)

    # ---- softmax(K) over the sequence axis (per batch element, per channel).
    #      exp/normalization in f32; divide -> EUP reciprocal + VPU multiply.
    k_max = jnp.max(k, axis=1, keepdims=True)                              # [Bt, 1, C]
    exp_k = jnp.exp(k - k_max)
    sk = exp_k * pl.reciprocal(jnp.sum(exp_k, axis=1, keepdims=True), approx=True)

    # ---- softmax(Q) over the head-channel axis, done once for all heads in a
    #      [M, H, hk] view (no per-head masked lane-segment reductions).
    q3 = q.reshape(M, H, hk)
    q_max = jnp.max(q3, axis=-1, keepdims=True)                            # [M, H, 1]
    exp_q = jnp.exp(q3 - q_max)
    sq = (exp_q * pl.reciprocal(jnp.sum(exp_q, axis=-1, keepdims=True), approx=True)
          ).reshape(Bt, N, C)

    head_mask = mask_ref[...]                                              # [C, C] f32

    # ---- Context + attended values. The block-diagonal mask zeroes cross-head
    #      (c, d) channel pairs, so one dense [C, C] context per batch element is
    #      exactly the per-head contexts; the heads land already concatenated
    #      along the channel axis (no lane-axis concat needed).
    for b in range(Bt):   # static unroll; batch_tile is capped so Bt*N stays small
        ctx = jnp.dot(sk[b].T, v[b], preferred_element_type=jnp.float32)   # [C, C]
        ctx = ctx * head_mask
        att = jnp.dot(sq[b], ctx, preferred_element_type=jnp.float32)      # [N, C]
        agg_ref[b * N:(b + 1) * N, :] = att.astype(agg_ref.dtype)

    # ---- Output reprojection for all rows at once (bf16 MXU, f32 acc) + bias.
    out = jnp.dot(agg_ref[...], wr_ref[...], preferred_element_type=jnp.float32)
    out = out + br_ref[...]
    o_ref[...] = out.reshape(Bt, N, C).astype(o_ref.dtype)


def efficient_attention(x, wq, wk, wv, wr, br, *, head_count,
                        batch_tile=None, target_rows=512):
    """x: [B, N, C] -> [B, N, C]. Weights are the PyTorch nn.Linear weights."""
    B, N, C = x.shape
    assert C % head_count == 0, "head_count must divide the hidden size"
    hk = C // head_count

    # Batch several batch elements per grid step so the projection/reprojection
    # matmuls see >= ~128-512 rows (tiny-N ViT blocks otherwise starve the MXU).
    if batch_tile is None:
        batch_tile = 1
        for cand in range(1, B + 1):
            if B % cand == 0 and cand * N <= target_rows:
                batch_tile = cand
    assert B % batch_tile == 0, "batch_tile must divide the batch"
    n_tiles = B // batch_tile

    # Host-side parameter prep (free under jit): fuse + transpose the QKV weights,
    # transpose the reprojection weight, build the block-diagonal head mask.
    wqkv_t = jnp.concatenate([wq.T, wk.T, wv.T], axis=1).astype(jnp.bfloat16)  # [C, 3C]
    wr_t = wr.T.astype(jnp.bfloat16)                                           # [C, C]
    br2 = br.reshape(1, C).astype(jnp.float32)
    head_mask = jnp.asarray(
        np.kron(np.eye(head_count, dtype=np.float32),
                np.ones((hk, hk), dtype=np.float32)))                          # [C, C]
    x_bf = x.astype(jnp.bfloat16)   # bf16 MXU inputs; also halves the x DMA traffic

    kernel = functools.partial(_eff_attn_kernel, head_count=head_count)
    return pl.pallas_call(
        kernel,
        out_shape=jax.ShapeDtypeStruct((B, N, C), x.dtype),
        grid_spec=pltpu.PrefetchScalarGridSpec(
            num_scalar_prefetch=0,
            grid=(n_tiles,),
            in_specs=[
                pl.BlockSpec((batch_tile, N, C), lambda t: (t, 0, 0)),  # x tile
                pl.BlockSpec((C, 3 * C), lambda t: (0, 0)),             # Wqkv^T (resident)
                pl.BlockSpec((C, C), lambda t: (0, 0)),                 # Wr^T   (resident)
                pl.BlockSpec((1, C), lambda t: (0, 0)),                 # bias   (resident)
                pl.BlockSpec((C, C), lambda t: (0, 0)),                 # head mask (resident)
            ],
            out_specs=pl.BlockSpec((batch_tile, N, C), lambda t: (t, 0, 0)),
            scratch_shapes=[pltpu.VMEM((batch_tile * N, C), jnp.bfloat16)],
        ),
        compiler_params=pltpu.CompilerParams(
            dimension_semantics=("parallel",)),
    )(x_bf, wqkv_t, wr_t, br2, head_mask)


def efficient_attention_ref(x, wq, wk, wv, wr, br, *, head_count):
    """Pure-JAX f32 reference mirroring the PyTorch forward exactly."""
    B, N, C = x.shape
    hk = C // head_count
    queries = jnp.einsum("bnc,oc->bon", x, wq)   # [B, C, N]
    keys = jnp.einsum("bnc,oc->bon", x, wk)
    values = jnp.einsum("bnc,oc->bon", x, wv)
    outs = []
    for i in range(head_count):
        key = jax.nn.softmax(keys[:, i * hk:(i + 1) * hk, :], axis=2)
        query = jax.nn.softmax(queries[:, i * hk:(i + 1) * hk, :], axis=1)
        value = values[:, i * hk:(i + 1) * hk, :]
        context = key @ jnp.swapaxes(value, 1, 2)            # [B, hk, hk]
        attended = jnp.swapaxes(context, 1, 2) @ query       # [B, hk, N]
        outs.append(attended)
    agg = jnp.concatenate(outs, axis=1)                      # [B, C, N]
    return jnp.einsum("bcn,oc->bno", agg, wr) + br


if __name__ == "__main__":
    B, N, C = 4, 8, 32
    head_count = 4

    key = jax.random.PRNGKey(0)
    kx, kq, kk, kv, kr, kb = jax.random.split(key, 6)

    x = jax.random.normal(kx, (B, N, C), dtype=jnp.float32)
    scale = 1.0 / jnp.sqrt(C)
    wq = jax.random.uniform(kq, (C, C), jnp.float32, -scale, scale)
    wk = jax.random.uniform(kk, (C, C), jnp.float32, -scale, scale)
    wv = jax.random.uniform(kv, (C, C), jnp.float32, -scale, scale)
    wr = jax.random.uniform(kr, (C, C), jnp.float32, -scale, scale)
    br = jax.random.uniform(kb, (C,), jnp.float32, -scale, scale)
    # `temperature` exists in the module but is unused in forward (parity only).
    temperature = jnp.ones((head_count, 1, 1), dtype=jnp.float32)  # noqa: F841

    # batch_tile=2 -> grid=(2,): exercises the tiled index_map and gives a >=2-way
    # "parallel" grid axis (v7x dual-TensorCore); larger batches use the heuristic.
    out = efficient_attention(x, wq, wk, wv, wr, br,
                              head_count=head_count, batch_tile=2)
    out = jax.block_until_ready(out)

    ref = efficient_attention_ref(x, wq, wk, wv, wr, br, head_count=head_count)
    assert out.shape == (B, N, C)
    # Tolerance reflects bf16 MXU inputs + approx EUP reciprocals in the kernel.
    assert jnp.allclose(out, ref, atol=5e-2, rtol=5e-2), "mismatch vs reference"

    print("KERNEL_OK")
</pallas_src>

<mosaic_0001>
module attributes {stable_mosaic.version = 11 : i64} {
  func.func @_eff_attn_kernel(%arg0: i32, %arg1: memref<2x8x32xbf16, #tpu.memory_space<vmem>>, %arg2: memref<32x96xbf16, #tpu.memory_space<vmem>>, %arg3: memref<32x32xbf16, #tpu.memory_space<vmem>>, %arg4: memref<1x32xf32, #tpu.memory_space<vmem>>, %arg5: memref<32x32xf32, #tpu.memory_space<vmem>>, %arg6: memref<2x8x32xf32, #tpu.memory_space<vmem>>, %arg7: memref<16x32xbf16, #tpu.memory_space<vmem>>) attributes {dimension_semantics = [#tpu.dimension_semantics<parallel>], iteration_bounds = array<i64: 2>, scalar_prefetch = 0 : i64, scratch_operands = 1 : i64, tpu.core_type = #tpu.core_type<tc>, window_params = [{transform_indices = @transform_0, window_bounds = array<i64: 2, 8, 32>}, {pipeline_mode = #tpu.pipeline_mode<synchronous>, transform_indices = @transform_1, window_bounds = array<i64: 32, 96>}, {pipeline_mode = #tpu.pipeline_mode<synchronous>, transform_indices = @transform_2, window_bounds = array<i64: 32, 32>}, {pipeline_mode = #tpu.pipeline_mode<synchronous>, transform_indices = @transform_3, window_bounds = array<i64: 1, 32>}, {pipeline_mode = #tpu.pipeline_mode<synchronous>, transform_indices = @transform_4, window_bounds = array<i64: 32, 32>}, {transform_indices = @transform_5, window_bounds = array<i64: 2, 8, 32>}]} {
    %c0 = arith.constant 0 : index
    %c0_0 = arith.constant 0 : index
    %c0_1 = arith.constant 0 : index
    %0 = vector.load %arg1[%c0, %c0_0, %c0_1] : memref<2x8x32xbf16, #tpu.memory_space<vmem>>, vector<2x8x32xbf16>
    %1 = vector.shape_cast %0 : vector<2x8x32xbf16> to vector<16x32xbf16>
    %c0_2 = arith.constant 0 : index
    %c0_3 = arith.constant 0 : index
    %2 = vector.load %arg2[%c0_2, %c0_3] : memref<32x96xbf16, #tpu.memory_space<vmem>>, vector<32x96xbf16>
    %cst = arith.constant dense<0.000000e+00> : vector<16x96xf32>
    %3 = tpu.matmul %1, %2, %cst {dimension_numbers = #tpu.dot_dimension_numbers<[1], [0], [0], [1], [0, 0, 1, 1], [], []>} : vector<16x32xbf16>, vector<32x96xbf16>, vector<16x96xf32> -> vector<16x96xf32>
    %4 = vector.extract_strided_slice %3 {offsets = [0, 0], sizes = [16, 32], strides = [1, 1]} : vector<16x96xf32> to vector<16x32xf32>
    %5 = vector.extract_strided_slice %3 {offsets = [0, 32], sizes = [16, 32], strides = [1, 1]} : vector<16x96xf32> to vector<16x32xf32>
    %6 = vector.shape_cast %5 : vector<16x32xf32> to vector<2x8x32xf32>
    %7 = vector.extract_strided_slice %3 {offsets = [0, 64], sizes = [16, 32], strides = [1, 1]} : vector<16x96xf32> to vector<16x32xf32>
    %8 = vector.shape_cast %7 : vector<16x32xf32> to vector<2x8x32xf32>
    %cst_4 = arith.constant dense<0xFF800000> : vector<2x32xf32>
    %9 = vector.multi_reduction <maximumf>, %6, %cst_4 [1] : vector<2x8x32xf32> to vector<2x32xf32>
    %10 = vector.shape_cast %9 : vector<2x32xf32> to vector<2x1x32xf32>
    %11 = vector.broadcast %10 : vector<2x1x32xf32> to vector<2x8x32xf32>
    %12 = arith.subf %6, %11 : vector<2x8x32xf32>
    %13 = math.exp %12 : vector<2x8x32xf32>
    %cst_5 = arith.constant dense<0.000000e+00> : vector<2x32xf32>
    %14 = vector.multi_reduction <add>, %13, %cst_5 [1] : vector<2x8x32xf32> to vector<2x32xf32>
    %15 = vector.shape_cast %14 : vector<2x32xf32> to vector<2x1x32xf32>
    %16 = tpu.reciprocal %15 {approx = true} : vector<2x1x32xf32> -> vector<2x1x32xf32>
    %17 = vector.broadcast %16 : vector<2x1x32xf32> to vector<2x8x32xf32>
    %18 = arith.mulf %13, %17 : vector<2x8x32xf32>
    %19 = vector.shape_cast %4 : vector<16x32xf32> to vector<16x4x8xf32>
    %cst_6 = arith.constant dense<0xFF800000> : vector<16x4xf32>
    %20 = vector.multi_reduction <maximumf>, %19, %cst_6 [2] : vector<16x4x8xf32> to vector<16x4xf32>
    %21 = vector.shape_cast %20 : vector<16x4xf32> to vector<16x4x1xf32>
    %22 = vector.broadcast %21 : vector<16x4x1xf32> to vector<16x4x8xf32>
    %23 = arith.subf %19, %22 : vector<16x4x8xf32>
    %24 = math.exp %23 : vector<16x4x8xf32>
    %cst_7 = arith.constant dense<0.000000e+00> : vector<16x4xf32>
    %25 = vector.multi_reduction <add>, %24, %cst_7 [2] : vector<16x4x8xf32> to vector<16x4xf32>
    %26 = vector.shape_cast %25 : vector<16x4xf32> to vector<16x4x1xf32>
    %27 = tpu.reciprocal %26 {approx = true} : vector<16x4x1xf32> -> vector<16x4x1xf32>
    %28 = vector.broadcast %27 : vector<16x4x1xf32> to vector<16x4x8xf32>
    %29 = arith.mulf %24, %28 : vector<16x4x8xf32>
    %30 = vector.shape_cast %29 : vector<16x4x8xf32> to vector<2x8x32xf32>
    %c0_8 = arith.constant 0 : index
    %c0_9 = arith.constant 0 : index
    %31 = vector.load %arg5[%c0_8, %c0_9] : memref<32x32xf32, #tpu.memory_space<vmem>>, vector<32x32xf32>
    %32 = vector.extract_strided_slice %18 {offsets = [0, 0, 0], sizes = [1, 8, 32], strides = [1, 1, 1]} : vector<2x8x32xf32> to vector<1x8x32xf32>
    %33 = vector.shape_cast %32 : vector<1x8x32xf32> to vector<8x32xf32>
    %34 = tpu.transpose %33, [1, 0] : vector<8x32xf32> -> vector<32x8xf32>
    %35 = vector.extract_strided_slice %8 {offsets = [0, 0, 0], sizes = [1, 8, 32], strides = [1, 1, 1]} : vector<2x8x32xf32> to vector<1x8x32xf32>
    %36 = vector.shape_cast %35 : vector<1x8x32xf32> to vector<8x32xf32>
    %cst_10 = arith.constant dense<0.000000e+00> : vector<32x32xf32>
    %37 = tpu.matmul %34, %36, %cst_10 {dimension_numbers = #tpu.dot_dimension_numbers<[1], [0], [0], [1], [0, 0, 1, 1], [], []>} : vector<32x8xf32>, vector<8x32xf32>, vector<32x32xf32> -> vector<32x32xf32>
    %38 = arith.mulf %37, %31 : vector<32x32xf32>
    %39 = vector.extract_strided_slice %30 {offsets = [0, 0, 0], sizes = [1, 8, 32], strides = [1, 1, 1]} : vector<2x8x32xf32> to vector<1x8x32xf32>
    %40 = vector.shape_cast %39 : vector<1x8x32xf32> to vector<8x32xf32>
    %cst_11 = arith.constant dense<0.000000e+00> : vector<8x32xf32>
    %41 = tpu.matmul %40, %38, %cst_11 {dimension_numbers = #tpu.dot_dimension_numbers<[1], [0], [0], [1], [0, 0, 1, 1], [], []>} : vector<8x32xf32>, vector<32x32xf32>, vector<8x32xf32> -> vector<8x32xf32>
    %42 = arith.truncf %41 : vector<8x32xf32> to vector<8x32xbf16>
    %c0_12 = arith.constant 0 : index
    %c0_13 = arith.constant 0 : index
    %43 = vector.load %arg7[%c0_12, %c0_13] : memref<16x32xbf16, #tpu.memory_space<vmem>>, vector<8x32xbf16>
    tpu.vector_store %arg7[%c0_12, %c0_13], %42 {strides = array<i32>} : memref<16x32xbf16, #tpu.memory_space<vmem>>, vector<8x32xbf16>,
    %44 = vector.extract_strided_slice %18 {offsets = [1, 0, 0], sizes = [1, 8, 32], strides = [1, 1, 1]} : vector<2x8x32xf32> to vector<1x8x32xf32>
    %45 = vector.shape_cast %44 : vector<1x8x32xf32> to vector<8x32xf32>
    %46 = tpu.transpose %45, [1, 0] : vector<8x32xf32> -> vector<32x8xf32>
    %47 = vector.extract_strided_slice %8 {offsets = [1, 0, 0], sizes = [1, 8, 32], strides = [1, 1, 1]} : vector<2x8x32xf32> to vector<1x8x32xf32>
    %48 = vector.shape_cast %47 : vector<1x8x32xf32> to vector<8x32xf32>
    %cst_14 = arith.constant dense<0.000000e+00> : vector<32x32xf32>
    %49 = tpu.matmul %46, %48, %cst_14 {dimension_numbers = #tpu.dot_dimension_numbers<[1], [0], [0], [1], [0, 0, 1, 1], [], []>} : vector<32x8xf32>, vector<8x32xf32>, vector<32x32xf32> -> vector<32x32xf32>
    %50 = arith.mulf %49, %31 : vector<32x32xf32>
    %51 = vector.extract_strided_slice %30 {offsets = [1, 0, 0], sizes = [1, 8, 32], strides = [1, 1, 1]} : vector<2x8x32xf32> to vector<1x8x32xf32>
    %52 = vector.shape_cast %51 : vector<1x8x32xf32> to vector<8x32xf32>
    %cst_15 = arith.constant dense<0.000000e+00> : vector<8x32xf32>
    %53 = tpu.matmul %52, %50, %cst_15 {dimension_numbers = #tpu.dot_dimension_numbers<[1], [0], [0], [1], [0, 0, 1, 1], [], []>} : vector<8x32xf32>, vector<32x32xf32>, vector<8x32xf32> -> vector<8x32xf32>
    %54 = arith.truncf %53 : vector<8x32xf32> to vector<8x32xbf16>
    %c8 = arith.constant 8 : index
    %c0_16 = arith.constant 0 : index
    %55 = vector.load %arg7[%c8, %c0_16] : memref<16x32xbf16, #tpu.memory_space<vmem>>, vector<8x32xbf16>
    tpu.vector_store %arg7[%c8, %c0_16], %54 {strides = array<i32>} : memref<16x32xbf16, #tpu.memory_space<vmem>>, vector<8x32xbf16>,
    %c0_17 = arith.constant 0 : index
    %c0_18 = arith.constant 0 : index
    %56 = vector.load %arg7[%c0_17, %c0_18] : memref<16x32xbf16, #tpu.memory_space<vmem>>, vector<16x32xbf16>
    %c0_19 = arith.constant 0 : index
    %c0_20 = arith.constant 0 : index
    %57 = vector.load %arg3[%c0_19, %c0_20] : memref<32x32xbf16, #tpu.memory_space<vmem>>, vector<32x32xbf16>
    %cst_21 = arith.constant dense<0.000000e+00> : vector<16x32xf32>
    %58 = tpu.matmul %56, %57, %cst_21 {dimension_numbers = #tpu.dot_dimension_numbers<[1], [0], [0], [1], [0, 0, 1, 1], [], []>} : vector<16x32xbf16>, vector<32x32xbf16>, vector<16x32xf32> -> vector<16x32xf32>
    %c0_22 = arith.constant 0 : index
    %c0_23 = arith.constant 0 : index
    %59 = vector.load %arg4[%c0_22, %c0_23] : memref<1x32xf32, #tpu.memory_space<vmem>>, vector<1x32xf32>
    %60 = vector.broadcast %59 : vector<1x32xf32> to vector<16x32xf32>
    %61 = arith.addf %58, %60 : vector<16x32xf32>
    %62 = vector.shape_cast %61 : vector<16x32xf32> to vector<2x8x32xf32>
    %c0_24 = arith.constant 0 : index
    %c0_25 = arith.constant 0 : index
    %c0_26 = arith.constant 0 : index
    %63 = vector.load %arg6[%c0_24, %c0_25, %c0_26] : memref<2x8x32xf32, #tpu.memory_space<vmem>>, vector<2x8x32xf32>
    tpu.vector_store %arg6[%c0_24, %c0_25, %c0_26], %62 {strides = array<i32>} : memref<2x8x32xf32, #tpu.memory_space<vmem>>, vector<2x8x32xf32>,
    return
  }
  func.func @transform_0(%arg0: i32) -> (i32, i32, i32) {
    %c0_i32 = arith.constant 0 : i32
    %c0_i32_0 = arith.constant 0 : i32
    %c0_i32_1 = arith.constant 0 : i32
    return %arg0, %c0_i32, %c0_i32_0 : i32, i32, i32
  }
  func.func @transform_1(%arg0: i32) -> (i32, i32) {
    %c0_i32 = arith.constant 0 : i32
    %c0_i32_0 = arith.constant 0 : i32
    %c0_i32_1 = arith.constant 0 : i32
    return %c0_i32, %c0_i32_0 : i32, i32
  }
  func.func @transform_2(%arg0: i32) -> (i32, i32) {
    %c0_i32 = arith.constant 0 : i32
    %c0_i32_0 = arith.constant 0 : i32
    %c0_i32_1 = arith.constant 0 : i32
    return %c0_i32, %c0_i32_0 : i32, i32
  }
  func.func @transform_3(%arg0: i32) -> (i32, i32) {
    %c0_i32 = arith.constant 0 : i32
    %c0_i32_0 = arith.constant 0 : i32
    %c0_i32_1 = arith.constant 0 : i32
    return %c0_i32, %c0_i32_0 : i32, i32
  }
  func.func @transform_4(%arg0: i32) -> (i32, i32) {
    %c0_i32 = arith.constant 0 : i32
    %c0_i32_0 = arith.constant 0 : i32
    %c0_i32_1 = arith.constant 0 : i32
    return %c0_i32, %c0_i32_0 : i32, i32
  }
  func.func @transform_5(%arg0: i32) -> (i32, i32, i32) {
    %c0_i32 = arith.constant 0 : i32
    %c0_i32_0 = arith.constant 0 : i32
    %c0_i32_1 = arith.constant 0 : i32
    return %arg0, %c0_i32, %c0_i32_0 : i32, i32, i32
  }
}

</mosaic_0001>

<llo_original>
// kernel: tpu_custom_call.1
$region0: #{tpu_custom_call.1}
  #allocation0 [shape = 'u32[]', space=smem, size = 0x4, offset = 0x4, fixed_abs, tag = 'smem constant byte address 0x4 - core index']
  #allocation1 [shape = 'u32[144,128]{1,0:T(1,128)}', space=vmem, size = 0x12000, scoped, tag = 'internal scratch']
  #allocation2 [shape = 'bf16[16,32]{1,0:T(16,128)(2,1)}', space=vmem, size = 0x1000, scoped, tag = 'scratch operand']
  %s0 = inlined_call_operand.hbm [shape: bf16[4,8,32], index: 0, kind: input, shape index: {}]
  %s1 = inlined_call_operand.hbm [shape: bf16[32,96], index: 1, kind: input, shape index: {}]
  %s2 = inlined_call_operand.hbm [shape: bf16[32,32], index: 2, kind: input, shape index: {}]
  %s3 = inlined_call_operand.vmem [shape: f32[1,32], index: 3, kind: input, shape index: {}]
  %s4 = inlined_call_operand.hbm [shape: f32[32,32], index: 4, kind: input, shape index: {}]
  %s5 = inlined_call_operand.hbm [shape: f32[4,8,32], index: 5, kind: output, shape index: {}]
  %s6 = sld [smem:[#allocation0]]
  $region69: #{tpu_custom_call.1} parent=0
    _
  %s8 = ssub.s32 1, %s6
  %s9 = scalar_select 0, %s8, %s6
  $region1: #{tpu_custom_call.1} parent=0
    #allocation3 [shape = 'u8[8192]{0}', space=vmem, size = 0x2000, scoped, tag = 'input window, operand 0']
    #allocation4 [shape = 's32[2]{0}', space=sflag, size = 0x8, scoped, tag = 'scoped memory for tpu_custom_call.1']
    #allocation5 [shape = 's32[2]{0}', space=sflag, size = 0x8, scoped, tag = 'scoped memory for tpu_custom_call.1']
    #allocation6 [shape = 'u8[8192]{0}', space=vmem, size = 0x2000, scoped, tag = 'input window, operand 1, single buffered']
    #allocation7 [shape = 's32[1]{0}', space=sflag, size = 0x4, scoped, tag = 'scoped memory for tpu_custom_call.1']
    #allocation8 [shape = 'u8[8192]{0}', space=vmem, size = 0x2000, scoped, tag = 'input window, operand 2, single buffered']
    #allocation9 [shape = 'u8[16384]{0}', space=vmem, size = 0x4000, scoped, tag = 'input window, operand 4, single buffered']
    #allocation10 [shape = 's32[1]{0}', space=sflag, size = 0x4, scoped, tag = 'scoped memory for tpu_custom_call.1']
    #allocation11 [shape = 'u8[16384]{0}', space=vmem, size = 0x4000, scoped, tag = 'output window, operand 0']
    %10 = vsyncpa [#allocation4], 0
    %s11 = scalar_lea.sflag [#allocation4], 1
    %12 = vsyncpa %s11, 0
    %13 = vsyncpa [#allocation7], 0
    %14 = vsyncpa [#allocation10], 0
    %15 = vsyncpa [#allocation5], 0
    %s16 = scalar_lea.sflag [#allocation5], 1
    %17 = vsyncpa %s16, 0
    loop: start=0, step=1, limit=4
    $region2: #{tpu_custom_call.1} parent=1 // loop_pre_header
      _
    $region3: #{tpu_custom_call.1} parent=1 // loop_header
      %s19 = sphi 0, %s23
      %p20 = scmp.ge.s32.totalorder %s19, 4
      %s29 = sphi 0, %s31
      %s32 = sphi 0, %s29
      %s33 = sphi 0, %s32
      %s49 = sphi 0, %s33
      %s53 = sphi 0, %s53
      %s55 = sphi 0, %s53
      %s56 = sphi 0, %s55
      %s70 = sphi 0, %s56
      %s74 = sphi 0, %s74
      %s76 = sphi 0, %s74
      %s77 = sphi 0, %s76
      %s91 = sphi 0, %s77
      %s95 = sphi 0, %s95
      %s97 = sphi 0, %s95
      %s98 = sphi 0, %s97
      %s112 = sphi 0, %s98
      %s116 = sphi 0, %s116
      %s118 = sphi 0, %s116
      %s119 = sphi 0, %s118
      %s133 = sphi 0, %s119
      %s139 = sphi 0, %s141
      %s142 = sphi 0, %s139
      %s143 = sphi 0, %s142
      %s159 = sphi 0, %s143
    $region4: #{tpu_custom_call.1} parent=1 // loop_header_branch
      %22 = sbr.rel (%p20) target = $region8
    $region5: #{tpu_custom_call.1} parent=1 // loop_body
      %s24 = ssub.s32 %s19, 1
      %s25 = ssub.s32 %s19, 2
      %s26 = sadd.s32 %s19, 1
      %s27 = ssub.s32 %s19, %s26
      %p28 = scmp.eq.s32.totalorder %s27, 0
      %s30 = sadd.s32 %s29, 1
      %s31 = scalar_select %p28, %s29, %s30
      %p34 = pneg %p28
      %p35 = scmp.eq.s32.totalorder %s19, 1
      %p36 = por %p34, %p35
      %p37 = scmp.ne.s32.totalorder %s29, %s32
      %p38 = scmp.eq.s32.totalorder %s19, 0
      %p39 = por %p37, %p38
      %p40 = scmp.ne.s32.totalorder %s29, %s32
      %p41 = scmp.eq.s32.totalorder %s24, 1
      %p42 = por %p40, %p41
      %p43 = scmp.ne.s32.totalorder %s32, %s33
      %p44 = scmp.eq.s32.totalorder %s24, 0
      %p45 = por %p43, %p44
      %p46 = scmp.ne.s32.totalorder %s32, %s33
      %p47 = scmp.eq.s32.totalorder %s25, 1
      %p48 = por %p46, %p47
      %p50 = scmp.ne.s32.totalorder %s33, %s49
      %p51 = scmp.eq.s32.totalorder %s25, 0
      %p52 = por %p50, %p51
      %s54 = sadd.s32 %s53, 1
      %p57 = scmp.eq.s32.totalorder %s19, 1
      %p58 = scmp.ne.s32.totalorder %s53, %s55
      %p59 = scmp.eq.s32.totalorder %s19, 0
      %p60 = por %p58, %p59
      %p61 = scmp.ne.s32.totalorder %s53, %s55
      %p62 = scmp.eq.s32.totalorder %s24, 1
      %p63 = por %p61, %p62
      %p64 = scmp.ne.s32.totalorder %s55, %s56
      %p65 = scmp.eq.s32.totalorder %s24, 0
      %p66 = por %p64, %p65
      %p67 = scmp.ne.s32.totalorder %s55, %s56
      %p68 = scmp.eq.s32.totalorder %s25, 1
      %p69 = por %p67, %p68
      %p71 = scmp.ne.s32.totalorder %s56, %s70
      %p72 = scmp.eq.s32.totalorder %s25, 0
      %p73 = por %p71, %p72
      %s75 = sadd.s32 %s74, 1
      %p78 = scmp.eq.s32.totalorder %s19, 1
      %p79 = scmp.ne.s32.totalorder %s74, %s76
      %p80 = scmp.eq.s32.totalorder %s19, 0
      %p81 = por %p79, %p80
      %p82 = scmp.ne.s32.totalorder %s74, %s76
      %p83 = scmp.eq.s32.totalorder %s24, 1
      %p84 = por %p82, %p83
      %p85 = scmp.ne.s32.totalorder %s76, %s77
      %p86 = scmp.eq.s32.totalorder %s24, 0
      %p87 = por %p85, %p86
      %p88 = scmp.ne.s32.totalorder %s76, %s77
      %p89 = scmp.eq.s32.totalorder %s25, 1
      %p90 = por %p88, %p89
      %p92 = scmp.ne.s32.totalorder %s77, %s91
      %p93 = scmp.eq.s32.totalorder %s25, 0
      %p94 = por %p92, %p93
      %s96 = sadd.s32 %s95, 1
      %p99 = scmp.eq.s32.totalorder %s19, 1
      %p100 = scmp.ne.s32.totalorder %s95, %s97
      %p101 = scmp.eq.s32.totalorder %s19, 0
      %p102 = por %p100, %p101
      %p103 = scmp.ne.s32.totalorder %s95, %s97
      %p104 = scmp.eq.s32.totalorder %s24, 1
      %p105 = por %p103, %p104
      %p106 = scmp.ne.s32.totalorder %s97, %s98
      %p107 = scmp.eq.s32.totalorder %s24, 0
      %p108 = por %p106, %p107
      %p109 = scmp.ne.s32.totalorder %s97, %s98
      %p110 = scmp.eq.s32.totalorder %s25, 1
      %p111 = por %p109, %p110
      %p113 = scmp.ne.s32.totalorder %s98, %s112
      %p114 = scmp.eq.s32.totalorder %s25, 0
      %p115 = por %p113, %p114
      %s117 = sadd.s32 %s116, 1
      %p120 = scmp.eq.s32.totalorder %s19, 1
      %p121 = scmp.ne.s32.totalorder %s116, %s118
      %p122 = scmp.eq.s32.totalorder %s19, 0
      %p123 = por %p121, %p122
      %p124 = scmp.ne.s32.totalorder %s116, %s118
      %p125 = scmp.eq.s32.totalorder %s24, 1
      %p126 = por %p124, %p125
      %p127 = scmp.ne.s32.totalorder %s118, %s119
      %p128 = scmp.eq.s32.totalorder %s24, 0
      %p129 = por %p127, %p128
      %p130 = scmp.ne.s32.totalorder %s118, %s119
      %p131 = scmp.eq.s32.totalorder %s25, 1
      %p132 = por %p130, %p131
      %p134 = scmp.ne.s32.totalorder %s119, %s133
      %p135 = scmp.eq.s32.totalorder %s25, 0
      %p136 = por %p134, %p135
      %s137 = ssub.s32 %s19, %s26
      %p138 = scmp.eq.s32.totalorder %s137, 0
      %s140 = sadd.s32 %s139, 1
      %s141 = scalar_select %p138, %s139, %s140
      %p144 = pneg %p138
      %p145 = scmp.eq.s32.totalorder %s19, 1
      %p146 = por %p144, %p145
      %p147 = scmp.ne.s32.totalorder %s139, %s142
      %p148 = scmp.eq.s32.totalorder %s19, 0
      %p149 = por %p147, %p148
      %p150 = scmp.ne.s32.totalorder %s139, %s142
      %p151 = scmp.eq.s32.totalorder %s24, 1
      %p152 = por %p150, %p151
      %p153 = scmp.ne.s32.totalorder %s142, %s143
      %p154 = scmp.eq.s32.totalorder %s24, 0
      %p155 = por %p153, %p154
      %p156 = scmp.ne.s32.totalorder %s142, %s143
      %p157 = scmp.eq.s32.totalorder %s25, 1
      %p158 = por %p156, %p157
      %p160 = scmp.ne.s32.totalorder %s143, %s159
      %p161 = scmp.eq.s32.totalorder %s25, 0
      %p162 = por %p160, %p161
      %p163 = scmp.le.s32.totalorder 1, %s19
      %p164 = scmp.lt.s32.totalorder %s19, 3
      %p165 = pnand %p163, %p164
      %p166 = pneg %p165
      // Predicated region
      $region9: #{tpu_custom_call.1} parent=5 // pred_check
        _
      $region10: #{tpu_custom_call.1} parent=5 // pred_check_branch
        %168 = sbr.rel (%p165) target = $region12
      $region11: #{tpu_custom_call.1} parent=5 // pred_region
        %s169 = ssub.s32 %s19, 1
        // Predicated region
        $region13: #{tpu_custom_call.1} parent=11 // pred_check
          %p170 = pneg %p66
        $region14: #{tpu_custom_call.1} parent=11 // pred_check_branch
          %172 = sbr.rel (%p170) target = $region16
        $region15: #{tpu_custom_call.1} parent=11 // pred_region
          %s174 = ssub.s32 256, 256
          %175 = vsyncadd [#allocation7], %s174
          %s176 = sshll.u32 [#allocation6], 4
          %s177 = int_to_ptr.vmem [resolvable:$true] %s176
          %182 = dma.hbm_to_vmem [thread:$0]  %s1, 256, %s177, [#allocation7], 64, 64, 4
        $region16: #{tpu_custom_call.1} parent=11 // pred_fallthru
          _
        // Predicated region
        $region17: #{tpu_custom_call.1} parent=11 // pred_check
          %p183 = pneg %p87
        $region18: #{tpu_custom_call.1} parent=11 // pred_check_branch
          %185 = sbr.rel (%p183) target = $region20
        $region19: #{tpu_custom_call.1} parent=11 // pred_region
          %s187 = ssub.s32 256, 256
          %188 = vsyncadd [#allocation7], %s187
          %s189 = sshll.u32 [#allocation8], 4
          %s190 = int_to_ptr.vmem [resolvable:$true] %s189
          %195 = dma.hbm_to_vmem [thread:$0]  %s2, 256, %s190, [#allocation7], 64, 64, 4
        $region20: #{tpu_custom_call.1} parent=11 // pred_fallthru
          _
        // Predicated region
        $region21: #{tpu_custom_call.1} parent=11 // pred_check
          %p196 = pneg %p108
        $region22: #{tpu_custom_call.1} parent=11 // pred_check_branch
          %198 = sbr.rel (%p196) target = $region24
        $region23: #{tpu_custom_call.1} parent=11 // pred_region
          _
        $region24: #{tpu_custom_call.1} parent=11 // pred_fallthru
          _
        // Predicated region
        $region25: #{tpu_custom_call.1} parent=11 // pred_check
          %p199 = pneg %p129
        $region26: #{tpu_custom_call.1} parent=11 // pred_check_branch
          %201 = sbr.rel (%p199) target = $region28
        $region27: #{tpu_custom_call.1} parent=11 // pred_region
          %s203 = ssub.s32 512, 512
          %204 = vsyncadd [#allocation10], %s203
          %s205 = sshll.u32 [#allocation9], 4
          %s206 = int_to_ptr.vmem [resolvable:$true] %s205
          %211 = dma.hbm_to_vmem [thread:$0]  %s4, 512, %s206, [#allocation10], 128, 128, 8
        $region28: #{tpu_custom_call.1} parent=11 // pred_fallthru
          _
      $region12: #{tpu_custom_call.1} parent=5 // pred_fallthru
        _
      %p212 = scmp.lt.s32.totalorder %s19, 2
      // Predicated region
      $region29: #{tpu_custom_call.1} parent=5 // pred_check
        %p213 = pneg %p212
      $region30: #{tpu_custom_call.1} parent=5 // pred_check_branch
        %215 = sbr.rel (%p213) target = $region32
      $region31: #{tpu_custom_call.1} parent=5 // pred_region
        // Predicated region
        $region33: #{tpu_custom_call.1} parent=31 // pred_check
          %p216 = pneg %p39
        $region34: #{tpu_custom_call.1} parent=31 // pred_check_branch
          %218 = sbr.rel (%p216) target = $region36
        $region35: #{tpu_custom_call.1} parent=31 // pred_region
          %s219 = sand.u32 %s29, 1
          %s220 = scalar_lea.sflag [#allocation4], %s219
          %s221 = sand.u32 %s29, 1
          %s222 = smul.addr %s221, 8
          %s223 = scalar_lea.vmem [#allocation3], %s222
          %s224 = smul.u32 2, %s19
          %s226 = ssub.s32 128, 128
          %227 = vsyncadd %s220, %s226
          %s228 = smul.addr %s224, 64
          %s229 = scalar_lea.hbm %s0, %s228
          %s230 = sshll.u32 %s223, 4
          %s231 = int_to_ptr.vmem [resolvable:$true] %s230
          %236 = dma.hbm_to_vmem [thread:$0]  %s229, 128, %s231, %s220, 64, 64, 4
        $region36: #{tpu_custom_call.1} parent=31 // pred_fallthru
          _
      $region32: #{tpu_custom_call.1} parent=5 // pred_fallthru
        _
      %p237 = scmp.le.s32.totalorder 1, %s19
      %p238 = scmp.lt.s32.totalorder %s19, 3
      %p239 = pnand %p237, %p238
      %p240 = pneg %p239
      // Predicated region
      $region37: #{tpu_custom_call.1} parent=5 // pred_check
        _
      $region38: #{tpu_custom_call.1} parent=5 // pred_check_branch
        %242 = sbr.rel (%p239) target = $region40
      $region39: #{tpu_custom_call.1} parent=5 // pred_region
        %s243 = ssub.s32 %s19, 1
        %s244 = sand.u32 %s32, 1
        %s245 = scalar_lea.sflag [#allocation4], %s244
        %s246 = sand.u32 %s32, 1
        %s247 = smul.addr %s246, 8
        %s248 = scalar_lea.vmem [#allocation3], %s247
        // Predicated region
        $region41: #{tpu_custom_call.1} parent=39 // pred_check
          %p249 = pneg %p45
        $region42: #{tpu_custom_call.1} parent=39 // pred_check_branch
          %251 = sbr.rel (%p249) target = $region44
        $region43: #{tpu_custom_call.1} parent=39 // pred_region
          %252 = dma.done %s245, 128
        $region44: #{tpu_custom_call.1} parent=39 // pred_fallthru
          _
        // Predicated region
        $region45: #{tpu_custom_call.1} parent=39 // pred_check
          %p253 = pneg %p66
        $region46: #{tpu_custom_call.1} parent=39 // pred_check_branch
          %255 = sbr.rel (%p253) target = $region48
        $region47: #{tpu_custom_call.1} parent=39 // pred_region
          %256 = dma.done [#allocation7], 256
        $region48: #{tpu_custom_call.1} parent=39 // pred_fallthru
          _
        // Predicated region
        $region49: #{tpu_custom_call.1} parent=39 // pred_check
          %p257 = pneg %p87
        $region50: #{tpu_custom_call.1} parent=39 // pred_check_branch
          %259 = sbr.rel (%p257) target = $region52
        $region51: #{tpu_custom_call.1} parent=39 // pred_region
          %260 = dma.done [#allocation7], 256
        $region52: #{tpu_custom_call.1} parent=39 // pred_fallthru
          _
        // Predicated region
        $region53: #{tpu_custom_call.1} parent=39 // pred_check
          %p261 = pneg %p129
        $region54: #{tpu_custom_call.1} parent=39 // pred_check_branch
          %263 = sbr.rel (%p261) target = $region56
        $region55: #{tpu_custom_call.1} parent=39 // pred_region
          %264 = dma.done [#allocation10], 512
        $region56: #{tpu_custom_call.1} parent=39 // pred_fallthru
          _
        %s265 = sand.u32 %s32, 1
        %s266 = scalar_lea.sflag [#allocation4], %s265
        %s267 = sand.u32 %s32, 1
        %s268 = smul.addr %s267, 8
        %s269 = scalar_lea.vmem [#allocation3], %s268
        %p270 = pneg %p45
        %p271 = pneg %p42
        %p272 = pneg %p66
        %p273 = pneg %p63
        %p274 = pneg %p87
        %p275 = pneg %p84
        %p276 = pneg %p108
        %p277 = pneg %p105
        %p278 = pneg %p129
        %p279 = pneg %p126
        %p280 = pneg %p155
        %p281 = pneg %p152
        %s282 = sand.u32 %s142, 1
        %s283 = scalar_lea.sflag [#allocation5], %s282
        %s284 = sand.u32 %s142, 1
        %s285 = smul.addr %s284, 16
        %s286 = scalar_lea.vmem [#allocation11], %s285
        %s287 = smul.u32 2, %s24
        %s288 = smul.u32 2, %s24
        %v290 = vld [vmem:[%s248] sm:$0xf]
        %v291 = vld [vmem:[%s248 + $0x4] sm:$0xf]
        %v292 = vld [vmem:[#allocation6] sm:$0xf]
        %v293 = vld [vmem:[#allocation6 + $0x4] sm:$0xf]
        %v294 = vld [vmem:[#allocation6 + $0x8] sm:$0xf]
        %v295 = vld [vmem:[#allocation6 + $0xc] sm:$0xf]
        %v298 = vunpack.c.l.b16 %v290
        %v299 = vunpack.c.l.b16 %v291
        %v300 = vpack.c.b16 %v299, %v298
        %v305 = vunpack.c.l.b16 %v292
        %v306 = vunpack.c.l.b16 %v293
        %v307 = vunpack.c.l.b16 %v294
        %v308 = vunpack.c.l.b16 %v295
        %v309 = vpack.c.b16 %v306, %v305
        %v310 = vpack.c.b16 %v308, %v307
        %vm313 = vcmask 261120
        %v315 = vsel %vm313, %v300, 0
        %317 = vmatprep.subr.bf16.mxu0 0
        %318 = vmatpush1.bf16.msra.mxu0 %v309
        %319 = vmatprep.subr.bf16.mxu0 0
        %320 = vmatpush1.bf16.msra.mxu0 %v310
        %321 = vmatprep.subr.bf16.mxu0 0
        %322 = vmatpush1.bf16.msra.mxu0 0
        %323 = vmatprep.subr.bf16.mxu0 0
        %324 = vmatpush1.bf16.msra.mxu0 0
        %325 = vmatprep.subr.bf16.mxu0 0
        %326 = vmatpush1.bf16.msra.mxu0 0
        %327 = vmatprep.subr.bf16.mxu0 0
        %328 = vmatpush1.bf16.msra.mxu0 0
        %329 = vmatprep.subr.bf16.mxu0 0
        %330 = vmatpush1.bf16.msra.mxu0 0
        %331 = vmatprep.subr.bf16.mxu0 0
        %332 = vmatpush1.bf16.msra.mxu0 0
        %333 = vmatprep.subr.bf16.mxu0 0
        %334 = vmatpush1.bf16.msra.mxu0 0
        %335 = vmatprep.subr.bf16.mxu0 0
        %336 = vmatpush1.bf16.msra.mxu0 0
        %337 = vmatprep.subr.bf16.mxu0 0
        %338 = vmatpush1.bf16.msra.mxu0 0
        %339 = vmatprep.subr.bf16.mxu0 0
        %340 = vmatpush1.bf16.msra.mxu0 0
        %341 = vmatprep.subr.bf16.mxu0 0
        %342 = vmatpush1.bf16.msra.mxu0 0
        %343 = vmatprep.subr.bf16.mxu0 0
        %344 = vmatpush1.bf16.msra.mxu0 0
        %345 = vmatprep.subr.bf16.mxu0 0
        %346 = vmatpush1.bf16.msra.mxu0 0
        %347 = vmatprep.subr.bf16.mxu0 0
        %348 = vmatpush1.bf16.msra.mxu0 0
        %349 = vmatprep.mubr.bf16.mxu0 0
        %350 = vmatmul.mubr.bf16.gmra.mrb[0].mxu0 %v315
        %v351 = vpop.f32.mrb[0].mxu0
        %v352 = vadd.f32 0.0, %v351
        %v353 = vpop.f32.mrb[0].mxu0
        %v354 = vpop.f32.mrb[0].mxu0
        %v355 = vadd.f32 0.0, %v354
        %v356 = vpop.f32.mrb[0].mxu0
        %357 = vdwg.mxu0
        %vm358 = vcmask 523520
        %v359 = vsel %vm358, %v352, -inf
        %v360 = vrot.slane %v359, 4
        %v361 = vmax.f32 %v359, %v360
        %v362 = vrot.slane %v361, 2
        %v363 = vmax.f32 %v361, %v362
        %v364 = vrot.slane %v363, 1
        %v365 = vmax.f32 %v363, %v364
        %v366 = vsel %vm358, %v355, -inf
        %v367 = vrot.slane %v366, 4
        %v368 = vmax.f32 %v366, %v367
        %v369 = vrot.slane %v368, 2
        %v370 = vmax.f32 %v368, %v369
        %v371 = vrot.slane %v370, 1
        %v372 = vmax.f32 %v370, %v371
        %v373 = vsub.f32 %v352, %v365
        %v374 = vsub.f32 %v355, %v372
        %v375 = vmul.f32 %v373, 1.442695
        %v376 = vpow.pop %v375
        %v377 = vmul.f32 %v374, 1.442695
        %v378 = vpow.pop %v377
        %v379 = vsel %vm358, %v376, 0.0
        %v380 = vrot.slane %v379, 4
        %v381 = vadd.f32 %v379, %v380
        %v382 = vrot.slane %v381, 2
        %v383 = vadd.f32 %v381, %v382
        %v384 = vrot.slane %v383, 1
        %v385 = vadd.f32 %v383, %v384
        %v386 = vsel %vm358, %v378, 0.0
        %v387 = vrot.slane %v386, 4
        %v388 = vadd.f32 %v386, %v387
        %v389 = vrot.slane %v388, 2
        %v390 = vadd.f32 %v388, %v389
        %v391 = vrot.slane %v390, 1
        %v392 = vadd.f32 %v390, %v391
        %v393 = vrcp.pop %v385
        %v394 = vrcp.pop %v392
        %v395 = vmul.f32 %v376, %v393
        %v396 = vmul.f32 %v378, %v394
        %399 = vrot.lane.b32.xlu0 %v352, 120
        %v400 = vpop.permute.xlu0 %399
        %401 = vrot.lane.b32.xlu0 %v355, 120
        %v402 = vpop.permute.xlu0 %401
        %405 = vrot.lane.b32.xlu0 %v352, 112
        %v406 = vpop.permute.xlu0 %405
        %407 = vrot.lane.b32.xlu0 %v355, 112
        %v408 = vpop.permute.xlu0 %407
        %411 = vrot.lane.b32.xlu0 %v352, 104
        %v412 = vpop.permute.xlu0 %411
        %413 = vrot.lane.b32.xlu0 %v355, 104
        %v414 = vpop.permute.xlu0 %413
        %v417 = vcombine.low %v352, %v406
        %v418 = vcombine.high %v352, %v406
        %v420 = vunpack.c.l.s4 1983009808
        %v421 = vunpack.c.0.s8 %v420
        %v422 = vlaneseq
        %v423 = vshrl.u32 %v422, 7
        %v424 = vsub.s32 %v421, %v423
        %v425 = vrot.slane %v417, %v424
        %v427 = vunpack.c.l.s4 1983009808
        %v428 = vunpack.c.0.s8 %v427
        %v429 = vlaneseq
        %v430 = vshrl.u32 %v429, 7
        %v431 = vsub.s32 %v428, %v430
        %v432 = vrot.slane %v418, %v431
        %v433 = vcombine.low %v400, %v412
        %v434 = vcombine.high %v400, %v412
        %v436 = vunpack.c.l.s4 1983009808
        %v437 = vunpack.c.0.s8 %v436
        %v438 = vlaneseq
        %v439 = vshrl.u32 %v438, 7
        %v440 = vsub.s32 %v437, %v439
        %v441 = vrot.slane %v433, %v440
        %v443 = vunpack.c.l.s4 1983009808
        %v444 = vunpack.c.0.s8 %v443
        %v445 = vlaneseq
        %v446 = vshrl.u32 %v445, 7
        %v447 = vsub.s32 %v444, %v446
        %v448 = vrot.slane %v434, %v447
        %v449 = vcombine.low %v425, %v441
        %v450 = vcombine.high %v425, %v441
        %v452 = vunpack.c.l.s4 1934713408
        %v453 = vunpack.c.0.s8 %v452
        %v454 = vlaneseq
        %v455 = vshrl.u32 %v454, 7
        %v456 = vsub.s32 %v453, %v455
        %v457 = vrot.slane %v449, %v456
        %v459 = vunpack.c.l.s4 1934713408
        %v460 = vunpack.c.0.s8 %v459
        %v461 = vlaneseq
        %v462 = vshrl.u32 %v461, 7
        %v463 = vsub.s32 %v460, %v462
        %v464 = vrot.slane %v450, %v463
        %v465 = vcombine.low %v432, %v448
        %v466 = vcombine.high %v432, %v448
        %v468 = vunpack.c.l.s4 1934713408
        %v469 = vunpack.c.0.s8 %v468
        %v470 = vlaneseq
        %v471 = vshrl.u32 %v470, 7
        %v472 = vsub.s32 %v469, %v471
        %v473 = vrot.slane %v465, %v472
        %v475 = vunpack.c.l.s4 1934713408
        %v476 = vunpack.c.0.s8 %v475
        %v477 = vlaneseq
        %v478 = vshrl.u32 %v477, 7
        %v479 = vsub.s32 %v476, %v478
        %v480 = vrot.slane %v466, %v479
        %v481 = vcombine.high %v457, 0.0
        %v482 = vcombine.high %v464, 0.0
        %v483 = vcombine.high %v473, 0.0
        %v484 = vcombine.high %v480, 0.0
        %v485 = vcombine.low %v355, %v408
        %v486 = vcombine.high %v355, %v408
        %v488 = vunpack.c.l.s4 1983009808
        %v489 = vunpack.c.0.s8 %v488
        %v490 = vlaneseq
        %v491 = vshrl.u32 %v490, 7
        %v492 = vsub.s32 %v489, %v491
        %v493 = vrot.slane %v485, %v492
        %v495 = vunpack.c.l.s4 1983009808
        %v496 = vunpack.c.0.s8 %v495
        %v497 = vlaneseq
        %v498 = vshrl.u32 %v497, 7
        %v499 = vsub.s32 %v496, %v498
        %v500 = vrot.slane %v486, %v499
        %v501 = vcombine.low %v402, %v414
        %v502 = vcombine.high %v402, %v414
        %v504 = vunpack.c.l.s4 1983009808
        %v505 = vunpack.c.0.s8 %v504
        %v506 = vlaneseq
        %v507 = vshrl.u32 %v506, 7
        %v508 = vsub.s32 %v505, %v507
        %v509 = vrot.slane %v501, %v508
        %v511 = vunpack.c.l.s4 1983009808
        %v512 = vunpack.c.0.s8 %v511
        %v513 = vlaneseq
        %v514 = vshrl.u32 %v513, 7
        %v515 = vsub.s32 %v512, %v514
        %v516 = vrot.slane %v502, %v515
        %v517 = vcombine.low %v493, %v509
        %v518 = vcombine.high %v493, %v509
        %v520 = vunpack.c.l.s4 1934713408
        %v521 = vunpack.c.0.s8 %v520
        %v522 = vlaneseq
        %v523 = vshrl.u32 %v522, 7
        %v524 = vsub.s32 %v521, %v523
        %v525 = vrot.slane %v517, %v524
        %v527 = vunpack.c.l.s4 1934713408
        %v528 = vunpack.c.0.s8 %v527
        %v529 = vlaneseq
        %v530 = vshrl.u32 %v529, 7
        %v531 = vsub.s32 %v528, %v530
        %v532 = vrot.slane %v518, %v531
        %v533 = vcombine.low %v500, %v516
        %v534 = vcombine.high %v500, %v516
        %v536 = vunpack.c.l.s4 1934713408
        %v537 = vunpack.c.0.s8 %v536
        %v538 = vlaneseq
        %v539 = vshrl.u32 %v538, 7
        %v540 = vsub.s32 %v537, %v539
        %v541 = vrot.slane %v533, %v540
        %v543 = vunpack.c.l.s4 1934713408
        %v544 = vunpack.c.0.s8 %v543
        %v545 = vlaneseq
        %v546 = vshrl.u32 %v545, 7
        %v547 = vsub.s32 %v544, %v546
        %v548 = vrot.slane %v534, %v547
        %v549 = vcombine.high %v525, 0.0
        %v550 = vcombine.high %v532, 0.0
        %v551 = vcombine.high %v541, 0.0
        %v552 = vcombine.high %v548, 0.0
        %vm553 = vcmask 60416
        %v554 = vsel %vm553, %v457, -inf
        %555 = vmax.xlane.f32.xlu0 %v554
        %v556 = vpop.xlane.xlu0 %555
        %v557 = vsel %vm553, %v481, -inf
        %558 = vmax.xlane.f32.xlu0 %v557
        %v559 = vpop.xlane.xlu0 %558
        %v560 = vsel %vm553, %v464, -inf
        %561 = vmax.xlane.f32.xlu0 %v560
        %v562 = vpop.xlane.xlu0 %561
        %v563 = vsel %vm553, %v482, -inf
        %564 = vmax.xlane.f32.xlu0 %v563
        %v565 = vpop.xlane.xlu0 %564
        %v566 = vsel %vm553, %v473, -inf
        %567 = vmax.xlane.f32.xlu0 %v566
        %v568 = vpop.xlane.xlu0 %567
        %v569 = vsel %vm553, %v483, -inf
        %570 = vmax.xlane.f32.xlu0 %v569
        %v571 = vpop.xlane.xlu0 %570
        %v572 = vsel %vm553, %v480, -inf
        %573 = vmax.xlane.f32.xlu0 %v572
        %v574 = vpop.xlane.xlu0 %573
        %v575 = vsel %vm553, %v484, -inf
        %576 = vmax.xlane.f32.xlu0 %v575
        %v577 = vpop.xlane.xlu0 %576
        %v578 = vsel %vm553, %v525, -inf
        %579 = vmax.xlane.f32.xlu0 %v578
        %v580 = vpop.xlane.xlu0 %579
        %v581 = vsel %vm553, %v549, -inf
        %582 = vmax.xlane.f32.xlu0 %v581
        %v583 = vpop.xlane.xlu0 %582
        %v584 = vsel %vm553, %v532, -inf
        %585 = vmax.xlane.f32.xlu0 %v584
        %v586 = vpop.xlane.xlu0 %585
        %v587 = vsel %vm553, %v550, -inf
        %588 = vmax.xlane.f32.xlu0 %v587
        %v589 = vpop.xlane.xlu0 %588
        %v590 = vsel %vm553, %v541, -inf
        %591 = vmax.xlane.f32.xlu0 %v590
        %v592 = vpop.xlane.xlu0 %591
        %v593 = vsel %vm553, %v551, -inf
        %594 = vmax.xlane.f32.xlu0 %v593
        %v595 = vpop.xlane.xlu0 %594
        %v596 = vsel %vm553, %v548, -inf
        %597 = vmax.xlane.f32.xlu0 %v596
        %v598 = vpop.xlane.xlu0 %597
        %v599 = vsel %vm553, %v552, -inf
        %600 = vmax.xlane.f32.xlu0 %v599
        %v601 = vpop.xlane.xlu0 %600
        %v602 = vsub.f32 %v457, %v556
        %v603 = vsub.f32 %v481, %v559
        %v604 = vsub.f32 %v464, %v562
        %v605 = vsub.f32 %v482, %v565
        %v606 = vsub.f32 %v473, %v568
        %v607 = vsub.f32 %v483, %v571
        %v608 = vsub.f32 %v480, %v574
        %v609 = vsub.f32 %v484, %v577
        %v610 = vsub.f32 %v525, %v580
        %v611 = vsub.f32 %v549, %v583
        %v612 = vsub.f32 %v532, %v586
        %v613 = vsub.f32 %v550, %v589
        %v614 = vsub.f32 %v541, %v592
        %v615 = vsub.f32 %v551, %v595
        %v616 = vsub.f32 %v548, %v598
        %v617 = vsub.f32 %v552, %v601
        %v618 = vmul.f32 %v602, 1.442695
        %v619 = vpow.pop %v618
        %v620 = vmul.f32 %v603, 1.442695
        %v621 = vpow.pop %v620
        %v622 = vmul.f32 %v604, 1.442695
        %v623 = vpow.pop %v622
        %v624 = vmul.f32 %v605, 1.442695
        %v625 = vpow.pop %v624
        %v626 = vmul.f32 %v606, 1.442695
        %v627 = vpow.pop %v626
        %v628 = vmul.f32 %v607, 1.442695
        %v629 = vpow.pop %v628
        %v630 = vmul.f32 %v608, 1.442695
        %v631 = vpow.pop %v630
        %v632 = vmul.f32 %v609, 1.442695
        %v633 = vpow.pop %v632
        %v634 = vmul.f32 %v610, 1.442695
        %v635 = vpow.pop %v634
        %v636 = vmul.f32 %v611, 1.442695
        %v637 = vpow.pop %v636
        %v638 = vmul.f32 %v612, 1.442695
        %v639 = vpow.pop %v638
        %v640 = vmul.f32 %v613, 1.442695
        %v641 = vpow.pop %v640
        %v642 = vmul.f32 %v614, 1.442695
        %v643 = vpow.pop %v642
        %v644 = vmul.f32 %v615, 1.442695
        %v645 = vpow.pop %v644
        %v646 = vmul.f32 %v616, 1.442695
        %v647 = vpow.pop %v646
        %v648 = vmul.f32 %v617, 1.442695
        %v649 = vpow.pop %v648
        %v650 = vsel %vm553, %v619, 0.0
        %651 = vadd.xlane.f32.xlu0 %v650
        %v652 = vpop.xlane.xlu0 %651
        %v653 = vsel %vm553, %v621, 0.0
        %654 = vadd.xlane.f32.xlu0 %v653
        %v655 = vpop.xlane.xlu0 %654
        %v656 = vsel %vm553, %v623, 0.0
        %657 = vadd.xlane.f32.xlu0 %v656
        %v658 = vpop.xlane.xlu0 %657
        %v659 = vsel %vm553, %v625, 0.0
        %660 = vadd.xlane.f32.xlu0 %v659
        %v661 = vpop.xlane.xlu0 %660
        %v662 = vsel %vm553, %v627, 0.0
        %663 = vadd.xlane.f32.xlu0 %v662
        %v664 = vpop.xlane.xlu0 %663
        %v665 = vsel %vm553, %v629, 0.0
        %666 = vadd.xlane.f32.xlu0 %v665
        %v667 = vpop.xlane.xlu0 %666
        %v668 = vsel %vm553, %v631, 0.0
        %669 = vadd.xlane.f32.xlu0 %v668
        %v670 = vpop.xlane.xlu0 %669
        %v671 = vsel %vm553, %v633, 0.0
        %672 = vadd.xlane.f32.xlu0 %v671
        %v673 = vpop.xlane.xlu0 %672
        %v674 = vsel %vm553, %v635, 0.0
        %675 = vadd.xlane.f32.xlu0 %v674
        %v676 = vpop.xlane.xlu0 %675
        %v677 = vsel %vm553, %v637, 0.0
        %678 = vadd.xlane.f32.xlu0 %v677
        %v679 = vpop.xlane.xlu0 %678
        %v680 = vsel %vm553, %v639, 0.0
        %681 = vadd.xlane.f32.xlu0 %v680
        %v682 = vpop.xlane.xlu0 %681
        %v683 = vsel %vm553, %v641, 0.0
        %684 = vadd.xlane.f32.xlu0 %v683
        %v685 = vpop.xlane.xlu0 %684
        %v686 = vsel %vm553, %v643, 0.0
        %687 = vadd.xlane.f32.xlu0 %v686
        %v688 = vpop.xlane.xlu0 %687
        %v689 = vsel %vm553, %v645, 0.0
        %690 = vadd.xlane.f32.xlu0 %v689
        %v691 = vpop.xlane.xlu0 %690
        %v692 = vsel %vm553, %v647, 0.0
        %693 = vadd.xlane.f32.xlu0 %v692
        %v694 = vpop.xlane.xlu0 %693
        %v695 = vsel %vm553, %v649, 0.0
        %696 = vadd.xlane.f32.xlu0 %v695
        %v697 = vpop.xlane.xlu0 %696
        %v698 = vrcp.pop %v652
        %v699 = vrcp.pop %v655
        %v700 = vrcp.pop %v658
        %v701 = vrcp.pop %v661
        %v702 = vrcp.pop %v664
        %v703 = vrcp.pop %v667
        %v704 = vrcp.pop %v670
        %v705 = vrcp.pop %v673
        %v706 = vrcp.pop %v676
        %v707 = vrcp.pop %v679
        %v708 = vrcp.pop %v682
        %v709 = vrcp.pop %v685
        %v710 = vrcp.pop %v688
        %v711 = vrcp.pop %v691
        %v712 = vrcp.pop %v694
        %v713 = vrcp.pop %v697
        %v714 = vmul.f32 %v619, %v698
        %v715 = vmul.f32 %v621, %v699
        %v716 = vmul.f32 %v623, %v700
        %v717 = vmul.f32 %v625, %v701
        %v718 = vmul.f32 %v627, %v702
        %v719 = vmul.f32 %v629, %v703
        %v720 = vmul.f32 %v631, %v704
        %v721 = vmul.f32 %v633, %v705
        %v722 = vmul.f32 %v635, %v706
        %v723 = vmul.f32 %v637, %v707
        %v724 = vmul.f32 %v639, %v708
        %v725 = vmul.f32 %v641, %v709
        %v726 = vmul.f32 %v643, %v710
        %v727 = vmul.f32 %v645, %v711
        %v728 = vmul.f32 %v647, %v712
        %v729 = vmul.f32 %v649, %v713
        %v730 = vcombine.low %v714, %v716
        %v732 = vunpack.c.l.s4 1983009808
        %v733 = vunpack.c.0.s8 %v732
        %v734 = vlaneseq
        %v735 = vshrl.u32 %v734, 7
        %v736 = vsub.s32 %v733, %v735
        %v737 = vrot.slane %v730, %v736
        %v738 = vcombine.low %v715, %v717
        %v740 = vunpack.c.l.s4 1983009808
        %v741 = vunpack.c.0.s8 %v740
        %v742 = vlaneseq
        %v743 = vshrl.u32 %v742, 7
        %v744 = vsub.s32 %v741, %v743
        %v745 = vrot.slane %v738, %v744
        %v746 = vcombine.low %v718, %v720
        %v748 = vunpack.c.l.s4 1983009808
        %v749 = vunpack.c.0.s8 %v748
        %v750 = vlaneseq
        %v751 = vshrl.u32 %v750, 7
        %v752 = vsub.s32 %v749, %v751
        %v753 = vrot.slane %v746, %v752
        %v754 = vcombine.low %v719, %v721
        %v756 = vunpack.c.l.s4 1983009808
        %v757 = vunpack.c.0.s8 %v756
        %v758 = vlaneseq
        %v759 = vshrl.u32 %v758, 7
        %v760 = vsub.s32 %v757, %v759
        %v761 = vrot.slane %v754, %v760
        %v762 = vcombine.low %v737, %v745
        %v763 = vcombine.high %v737, %v745
        %v765 = vunpack.c.l.s4 1934713408
        %v766 = vunpack.c.0.s8 %v765
        %v767 = vlaneseq
        %v768 = vshrl.u32 %v767, 7
        %v769 = vsub.s32 %v766, %v768
        %v770 = vrot.slane %v762, %v769
        %v772 = vunpack.c.l.s4 1934713408
        %v773 = vunpack.c.0.s8 %v772
        %v774 = vlaneseq
        %v775 = vshrl.u32 %v774, 7
        %v776 = vsub.s32 %v773, %v775
        %v777 = vrot.slane %v763, %v776
        %v778 = vcombine.low %v753, %v761
        %v779 = vcombine.high %v753, %v761
        %v781 = vunpack.c.l.s4 1934713408
        %v782 = vunpack.c.0.s8 %v781
        %v783 = vlaneseq
        %v784 = vshrl.u32 %v783, 7
        %v785 = vsub.s32 %v782, %v784
        %v786 = vrot.slane %v778, %v785
        %v788 = vunpack.c.l.s4 1934713408
        %v789 = vunpack.c.0.s8 %v788
        %v790 = vlaneseq
        %v791 = vshrl.u32 %v790, 7
        %v792 = vsub.s32 %v789, %v791
        %v793 = vrot.slane %v779, %v792
        %v794 = vcombine.low %v770, %v786
        %v795 = vcombine.high %v770, %v786
        %v796 = vcombine.low %v777, %v793
        %v797 = vcombine.high %v777, %v793
        %v798 = vcombine.low %v722, %v724
        %v800 = vunpack.c.l.s4 1983009808
        %v801 = vunpack.c.0.s8 %v800
        %v802 = vlaneseq
        %v803 = vshrl.u32 %v802, 7
        %v804 = vsub.s32 %v801, %v803
        %v805 = vrot.slane %v798, %v804
        %v806 = vcombine.low %v723, %v725
        %v808 = vunpack.c.l.s4 1983009808
        %v809 = vunpack.c.0.s8 %v808
        %v810 = vlaneseq
        %v811 = vshrl.u32 %v810, 7
        %v812 = vsub.s32 %v809, %v811
        %v813 = vrot.slane %v806, %v812
        %v814 = vcombine.low %v726, %v728
        %v816 = vunpack.c.l.s4 1983009808
        %v817 = vunpack.c.0.s8 %v816
        %v818 = vlaneseq
        %v819 = vshrl.u32 %v818, 7
        %v820 = vsub.s32 %v817, %v819
        %v821 = vrot.slane %v814, %v820
        %v822 = vcombine.low %v727, %v729
        %v824 = vunpack.c.l.s4 1983009808
        %v825 = vunpack.c.0.s8 %v824
        %v826 = vlaneseq
        %v827 = vshrl.u32 %v826, 7
        %v828 = vsub.s32 %v825, %v827
        %v829 = vrot.slane %v822, %v828
        %v830 = vcombine.low %v805, %v813
        %v831 = vcombine.high %v805, %v813
        %v833 = vunpack.c.l.s4 1934713408
        %v834 = vunpack.c.0.s8 %v833
        %v835 = vlaneseq
        %v836 = vshrl.u32 %v835, 7
        %v837 = vsub.s32 %v834, %v836
        %v838 = vrot.slane %v830, %v837
        %v840 = vunpack.c.l.s4 1934713408
        %v841 = vunpack.c.0.s8 %v840
        %v842 = vlaneseq
        %v843 = vshrl.u32 %v842, 7
        %v844 = vsub.s32 %v841, %v843
        %v845 = vrot.slane %v831, %v844
        %v846 = vcombine.low %v821, %v829
        %v847 = vcombine.high %v821, %v829
        %v849 = vunpack.c.l.s4 1934713408
        %v850 = vunpack.c.0.s8 %v849
        %v851 = vlaneseq
        %v852 = vshrl.u32 %v851, 7
        %v853 = vsub.s32 %v850, %v852
        %v854 = vrot.slane %v846, %v853
        %v856 = vunpack.c.l.s4 1934713408
        %v857 = vunpack.c.0.s8 %v856
        %v858 = vlaneseq
        %v859 = vshrl.u32 %v858, 7
        %v860 = vsub.s32 %v857, %v859
        %v861 = vrot.slane %v847, %v860
        %v862 = vcombine.low %v838, %v854
        %v863 = vcombine.high %v838, %v854
        %v864 = vcombine.low %v845, %v861
        %v865 = vcombine.high %v845, %v861
        %868 = vrot.lane.b32.xlu0 %v795, 8
        %v869 = vpop.permute.xlu0 %868
        %870 = vrot.lane.b32.xlu0 %v863, 8
        %v871 = vpop.permute.xlu0 %870
        %876 = vrot.lane.b32.xlu0 %v796, 16
        %v877 = vpop.permute.xlu0 %876
        %878 = vrot.lane.b32.xlu0 %v864, 16
        %v879 = vpop.permute.xlu0 %878
        %884 = vrot.lane.b32.xlu0 %v797, 24
        %v885 = vpop.permute.xlu0 %884
        %886 = vrot.lane.b32.xlu0 %v865, 24
        %v887 = vpop.permute.xlu0 %886
        %vm890 = vcmask 64512
        %v891 = vsel %vm890, %v794, %v869
        %v892 = vsel %vm890, %v862, %v871
        %vm893 = vcmask 130048
        %v894 = vsel %vm893, %v891, %v877
        %v895 = vsel %vm893, %v892, %v879
        %vm896 = vcmask 195584
        %v897 = vsel %vm896, %v894, %v885
        %v898 = vsel %vm896, %v895, %v887
        %v899 = vld [vmem:[#allocation9] sm:$0xff]
        %v900 = vld [vmem:[#allocation9 + $0x8] sm:$0xff]
        %v901 = vld [vmem:[#allocation9 + $0x10] sm:$0xff]
        %v902 = vld [vmem:[#allocation9 + $0x18] sm:$0xff]
        %904 = vrot.lane.b32.xlu0 %v395, 96
        %v905 = vpop.permute.xlu0 %904
        %907 = vxpose.xlu0.b32.start [1/16] %v905, 128
        %908 = vxpose.xlu0.b32.cont [2/16] 0.0, 128
        %909 = vxpose.xlu0.b32.cont [3/16] 0.0, 128
        %910 = vxpose.xlu0.b32.cont [4/16] 0.0, 128
        %911 = vxpose.xlu0.b32.cont [5/16] 0.0, 128
        %912 = vxpose.xlu0.b32.cont [6/16] 0.0, 128
        %913 = vxpose.xlu0.b32.cont [7/16] 0.0, 128
        %914 = vxpose.xlu0.b32.cont [8/16] 0.0, 128
        %915 = vxpose.xlu0.b32.cont [9/16] 0.0, 128
        %916 = vxpose.xlu0.b32.cont [10/16] 0.0, 128
        %917 = vxpose.xlu0.b32.cont [11/16] 0.0, 128
        %918 = vxpose.xlu0.b32.cont [12/16] 0.0, 128
        %919 = vxpose.xlu0.b32.cont [13/16] 0.0, 128
        %920 = vxpose.xlu0.b32.cont [14/16] 0.0, 128
        %921 = vxpose.xlu0.b32.cont [15/16] 0.0, 128
        %922 = vxpose.xlu0.b32.end [16/16] 0.0, 128
        %v923 = vpop.trf.xlu0
        %v924 = vpop.trf.xlu0
        %v925 = vpop.trf.xlu0
        %v926 = vpop.trf.xlu0
        %v927 = vpop.trf.xlu0
        %v928 = vpop.trf.xlu0
        %v929 = vpop.trf.xlu0
        %v930 = vpop.trf.xlu0
        %v931 = vpop.trf.xlu0
        %v932 = vpop.trf.xlu0
        %v933 = vpop.trf.xlu0
        %v934 = vpop.trf.xlu0
        %v935 = vpop.trf.xlu0
        %v936 = vpop.trf.xlu0
        %v937 = vpop.trf.xlu0
        %v938 = vpop.trf.xlu0
        %939 = vrot.lane.b32.xlu0 %v352, 64
        %v940 = vpop.permute.xlu0 %939
        %v943 = vsel %vm890, %v923, 0
        %v946 = vsel %vm890, %v924, 0
        %v949 = vsel %vm890, %v925, 0
        %v952 = vsel %vm890, %v926, 0
        %954 = vmatprep.subr.mxu0 0.0
        %955 = vmatpush1.msra.mxu0 %v940
        %956 = vmatprep.subr.mxu0 0.0
        %957 = vmatpush1.msra.mxu0 0.0
        %958 = vmatprep.subr.mxu0 0.0
        %959 = vmatpush1.msra.mxu0 0.0
        %960 = vmatprep.subr.mxu0 0.0
        %961 = vmatpush1.msra.mxu0 0.0
        %962 = vmatprep.subr.mxu0 0.0
        %963 = vmatpush1.msra.mxu0 0.0
        %964 = vmatprep.subr.mxu0 0.0
        %965 = vmatpush1.msra.mxu0 0.0
        %966 = vmatprep.subr.mxu0 0.0
        %967 = vmatpush1.msra.mxu0 0.0
        %968 = vmatprep.subr.mxu0 0.0
        %969 = vmatpush1.msra.mxu0 0.0
        %970 = vmatprep.subr.mxu0 0.0
        %971 = vmatpush1.msra.mxu0 0.0
        %972 = vmatprep.subr.mxu0 0.0
        %973 = vmatpush1.msra.mxu0 0.0
        %974 = vmatprep.subr.mxu0 0.0
        %975 = vmatpush1.msra.mxu0 0.0
        %976 = vmatprep.subr.mxu0 0.0
        %977 = vmatpush1.msra.mxu0 0.0
        %978 = vmatprep.subr.mxu0 0.0
        %979 = vmatpush1.msra.mxu0 0.0
        %980 = vmatprep.subr.mxu0 0.0
        %981 = vmatpush1.msra.mxu0 0.0
        %982 = vmatprep.subr.mxu0 0.0
        %983 = vmatpush1.msra.mxu0 0.0
        %984 = vmatprep.subr.mxu0 0.0
        %985 = vmatpush1.msra.mxu0 0.0
        %986 = vmatprep.subr.mxu0 0.0
        %987 = vmatpush1.msra.mxu0 0.0
        %988 = vmatprep.subr.mxu0 0.0
        %989 = vmatpush1.msra.mxu0 0.0
        %990 = vmatprep.subr.mxu0 0.0
        %991 = vmatpush1.msra.mxu0 0.0
        %992 = vmatprep.subr.mxu0 0.0
        %993 = vmatpush1.msra.mxu0 0.0
        %994 = vmatprep.subr.mxu0 0.0
        %995 = vmatpush1.msra.mxu0 0.0
        %996 = vmatprep.subr.mxu0 0.0
        %997 = vmatpush1.msra.mxu0 0.0
        %998 = vmatprep.subr.mxu0 0.0
        %999 = vmatpush1.msra.mxu0 0.0
        %1000 = vmatprep.subr.mxu0 0.0
        %1001 = vmatpush1.msra.mxu0 0.0
        %1002 = vmatprep.subr.mxu0 0.0
        %1003 = vmatpush1.msra.mxu0 0.0
        %1004 = vmatprep.subr.mxu0 0.0
        %1005 = vmatpush1.msra.mxu0 0.0
        %1006 = vmatprep.subr.mxu0 0.0
        %1007 = vmatpush1.msra.mxu0 0.0
        %1008 = vmatprep.subr.mxu0 0.0
        %1009 = vmatpush1.msra.mxu0 0.0
        %1010 = vmatprep.subr.mxu0 0.0
        %1011 = vmatpush1.msra.mxu0 0.0
        %1012 = vmatprep.subr.mxu0 0.0
        %1013 = vmatpush1.msra.mxu0 0.0
        %1014 = vmatprep.subr.mxu0 0.0
        %1015 = vmatpush1.msra.mxu0 0.0
        %1016 = vmatprep.subr.mxu0 0.0
        %1017 = vmatpush1.msra.mxu0 0.0
        %1018 = vmatprep.mubr.f32.mxu0 0.0
        %1019 = vmatmul.mubr.f32.gmra.mrb[0].mxu0 %v943
        %v1020 = vpop.f32.mrb[0].mxu0
        %v1021 = vadd.f32 0.0, %v1020
        %v1022 = vpop.f32.mrb[0].mxu0
        %1023 = vmatprep.mubr.f32.mxu0 0.0
        %1024 = vmatmul.mubr.f32.gmra.mrb[0].mxu0 %v946
        %v1025 = vpop.f32.mrb[0].mxu0
        %v1026 = vadd.f32 0.0, %v1025
        %v1027 = vpop.f32.mrb[0].mxu0
        %1028 = vmatprep.mubr.f32.mxu0 0.0
        %1029 = vmatmul.mubr.f32.gmra.mrb[0].mxu0 %v949
        %v1030 = vpop.f32.mrb[0].mxu0
        %v1031 = vadd.f32 0.0, %v1030
        %v1032 = vpop.f32.mrb[0].mxu0
        %1033 = vmatprep.mubr.f32.mxu0 0.0
        %1034 = vmatmul.mubr.f32.gmra.mrb[0].mxu0 %v952
        %v1035 = vpop.f32.mrb[0].mxu0
        %v1036 = vadd.f32 0.0, %v1035
        %v1037 = vpop.f32.mrb[0].mxu0
        %1038 = vdwg.mxu0
        %v1039 = vmul.f32 %v1021, %v899
        %v1040 = vmul.f32 %v1026, %v900
        %v1041 = vmul.f32 %v1031, %v901
        %v1042 = vmul.f32 %v1036, %v902
        %v1044 = vsel %vm313, %v897, 0
        %1046 = vmatprep.subr.mxu0 0.0
        %1047 = vmatpush1.msra.mxu0 %v1039
        %1048 = vmatprep.subr.mxu0 0.0
        %1049 = vmatpush1.msra.mxu0 %v1040
        %1050 = vmatprep.subr.mxu0 0.0
        %1051 = vmatpush1.msra.mxu0 %v1041
        %1052 = vmatprep.subr.mxu0 0.0
        %1053 = vmatpush1.msra.mxu0 %v1042
        %1054 = vmatprep.subr.mxu0 0.0
        %1055 = vmatpush1.msra.mxu0 0.0
        %1056 = vmatprep.subr.mxu0 0.0
        %1057 = vmatpush1.msra.mxu0 0.0
        %1058 = vmatprep.subr.mxu0 0.0
        %1059 = vmatpush1.msra.mxu0 0.0
        %1060 = vmatprep.subr.mxu0 0.0
        %1061 = vmatpush1.msra.mxu0 0.0
        %1062 = vmatprep.subr.mxu0 0.0
        %1063 = vmatpush1.msra.mxu0 0.0
        %1064 = vmatprep.subr.mxu0 0.0
        %1065 = vmatpush1.msra.mxu0 0.0
        %1066 = vmatprep.subr.mxu0 0.0
        %1067 = vmatpush1.msra.mxu0 0.0
        %1068 = vmatprep.subr.mxu0 0.0
        %1069 = vmatpush1.msra.mxu0 0.0
        %1070 = vmatprep.subr.mxu0 0.0
        %1071 = vmatpush1.msra.mxu0 0.0
        %1072 = vmatprep.subr.mxu0 0.0
        %1073 = vmatpush1.msra.mxu0 0.0
        %1074 = vmatprep.subr.mxu0 0.0
        %1075 = vmatpush1.msra.mxu0 0.0
        %1076 = vmatprep.subr.mxu0 0.0
        %1077 = vmatpush1.msra.mxu0 0.0
        %1078 = vmatprep.subr.mxu0 0.0
        %1079 = vmatpush1.msra.mxu0 0.0
        %1080 = vmatprep.subr.mxu0 0.0
        %1081 = vmatpush1.msra.mxu0 0.0
        %1082 = vmatprep.subr.mxu0 0.0
        %1083 = vmatpush1.msra.mxu0 0.0
        %1084 = vmatprep.subr.mxu0 0.0
        %1085 = vmatpush1.msra.mxu0 0.0
        %1086 = vmatprep.subr.mxu0 0.0
        %1087 = vmatpush1.msra.mxu0 0.0
        %1088 = vmatprep.subr.mxu0 0.0
        %1089 = vmatpush1.msra.mxu0 0.0
        %1090 = vmatprep.subr.mxu0 0.0
        %1091 = vmatpush1.msra.mxu0 0.0
        %1092 = vmatprep.subr.mxu0 0.0
        %1093 = vmatpush1.msra.mxu0 0.0
        %1094 = vmatprep.subr.mxu0 0.0
        %1095 = vmatpush1.msra.mxu0 0.0
        %1096 = vmatprep.subr.mxu0 0.0
        %1097 = vmatpush1.msra.mxu0 0.0
        %1098 = vmatprep.subr.mxu0 0.0
        %1099 = vmatpush1.msra.mxu0 0.0
        %1100 = vmatprep.subr.mxu0 0.0
        %1101 = vmatpush1.msra.mxu0 0.0
        %1102 = vmatprep.subr.mxu0 0.0
        %1103 = vmatpush1.msra.mxu0 0.0
        %1104 = vmatprep.subr.mxu0 0.0
        %1105 = vmatpush1.msra.mxu0 0.0
        %1106 = vmatprep.subr.mxu0 0.0
        %1107 = vmatpush1.msra.mxu0 0.0
        %1108 = vmatprep.subr.mxu0 0.0
        %1109 = vmatpush1.msra.mxu0 0.0
        %1110 = vmatprep.mubr.f32.mxu0 0.0
        %1111 = vmatmul.mubr.f32.gmra.mrb[0].mxu0 %v1044
        %v1112 = vpop.f32.mrb[0].mxu0
        %v1113 = vadd.f32 0.0, %v1112
        %v1114 = vpop.f32.mrb[0].mxu0
        %1115 = vdwg.mxu0
        %v1116 = vpack.c.bf16 %v1113, %v1113
        %vm1117 = vcmask 257024
        %1118 = vst.msk [vmem:[#allocation2] sm:$0xf] %vm1117, %v1116
        %1120 = vrot.lane.b32.xlu0 %v396, 96
        %v1121 = vpop.permute.xlu0 %1120
        %1123 = vxpose.xlu0.b32.start [1/16] %v1121, 128
        %1124 = vxpose.xlu0.b32.cont [2/16] 0.0, 128
        %1125 = vxpose.xlu0.b32.cont [3/16] 0.0, 128
        %1126 = vxpose.xlu0.b32.cont [4/16] 0.0, 128
        %1127 = vxpose.xlu0.b32.cont [5/16] 0.0, 128
        %1128 = vxpose.xlu0.b32.cont [6/16] 0.0, 128
        %1129 = vxpose.xlu0.b32.cont [7/16] 0.0, 128
        %1130 = vxpose.xlu0.b32.cont [8/16] 0.0, 128
        %1131 = vxpose.xlu0.b32.cont [9/16] 0.0, 128
        %1132 = vxpose.xlu0.b32.cont [10/16] 0.0, 128
        %1133 = vxpose.xlu0.b32.cont [11/16] 0.0, 128
        %1134 = vxpose.xlu0.b32.cont [12/16] 0.0, 128
        %1135 = vxpose.xlu0.b32.cont [13/16] 0.0, 128
        %1136 = vxpose.xlu0.b32.cont [14/16] 0.0, 128
        %1137 = vxpose.xlu0.b32.cont [15/16] 0.0, 128
        %1138 = vxpose.xlu0.b32.end [16/16] 0.0, 128
        %v1139 = vpop.trf.xlu0
        %v1140 = vpop.trf.xlu0
        %v1141 = vpop.trf.xlu0
        %v1142 = vpop.trf.xlu0
        %v1143 = vpop.trf.xlu0
        %v1144 = vpop.trf.xlu0
        %v1145 = vpop.trf.xlu0
        %v1146 = vpop.trf.xlu0
        %v1147 = vpop.trf.xlu0
        %v1148 = vpop.trf.xlu0
        %v1149 = vpop.trf.xlu0
        %v1150 = vpop.trf.xlu0
        %v1151 = vpop.trf.xlu0
        %v1152 = vpop.trf.xlu0
        %v1153 = vpop.trf.xlu0
        %v1154 = vpop.trf.xlu0
        %1155 = vrot.lane.b32.xlu0 %v355, 64
        %v1156 = vpop.permute.xlu0 %1155
        %v1159 = vsel %vm890, %v1139, 0
        %v1162 = vsel %vm890, %v1140, 0
        %v1165 = vsel %vm890, %v1141, 0
        %v1168 = vsel %vm890, %v1142, 0
        %1170 = vmatprep.subr.mxu0 0.0
        %1171 = vmatpush1.msra.mxu0 %v1156
        %1172 = vmatprep.subr.mxu0 0.0
        %1173 = vmatpush1.msra.mxu0 0.0
        %1174 = vmatprep.subr.mxu0 0.0
        %1175 = vmatpush1.msra.mxu0 0.0
        %1176 = vmatprep.subr.mxu0 0.0
        %1177 = vmatpush1.msra.mxu0 0.0
        %1178 = vmatprep.subr.mxu0 0.0
        %1179 = vmatpush1.msra.mxu0 0.0
        %1180 = vmatprep.subr.mxu0 0.0
        %1181 = vmatpush1.msra.mxu0 0.0
        %1182 = vmatprep.subr.mxu0 0.0
        %1183 = vmatpush1.msra.mxu0 0.0
        %1184 = vmatprep.subr.mxu0 0.0
        %1185 = vmatpush1.msra.mxu0 0.0
        %1186 = vmatprep.subr.mxu0 0.0
        %1187 = vmatpush1.msra.mxu0 0.0
        %1188 = vmatprep.subr.mxu0 0.0
        %1189 = vmatpush1.msra.mxu0 0.0
        %1190 = vmatprep.subr.mxu0 0.0
        %1191 = vmatpush1.msra.mxu0 0.0
        %1192 = vmatprep.subr.mxu0 0.0
        %1193 = vmatpush1.msra.mxu0 0.0
        %1194 = vmatprep.subr.mxu0 0.0
        %1195 = vmatpush1.msra.mxu0 0.0
        %1196 = vmatprep.subr.mxu0 0.0
        %1197 = vmatpush1.msra.mxu0 0.0
        %1198 = vmatprep.subr.mxu0 0.0
        %1199 = vmatpush1.msra.mxu0 0.0
        %1200 = vmatprep.subr.mxu0 0.0
        %1201 = vmatpush1.msra.mxu0 0.0
        %1202 = vmatprep.subr.mxu0 0.0
        %1203 = vmatpush1.msra.mxu0 0.0
        %1204 = vmatprep.subr.mxu0 0.0
        %1205 = vmatpush1.msra.mxu0 0.0
        %1206 = vmatprep.subr.mxu0 0.0
        %1207 = vmatpush1.msra.mxu0 0.0
        %1208 = vmatprep.subr.mxu0 0.0
        %1209 = vmatpush1.msra.mxu0 0.0
        %1210 = vmatprep.subr.mxu0 0.0
        %1211 = vmatpush1.msra.mxu0 0.0
        %1212 = vmatprep.subr.mxu0 0.0
        %1213 = vmatpush1.msra.mxu0 0.0
        %1214 = vmatprep.subr.mxu0 0.0
        %1215 = vmatpush1.msra.mxu0 0.0
        %1216 = vmatprep.subr.mxu0 0.0
        %1217 = vmatpush1.msra.mxu0 0.0
        %1218 = vmatprep.subr.mxu0 0.0
        %1219 = vmatpush1.msra.mxu0 0.0
        %1220 = vmatprep.subr.mxu0 0.0
        %1221 = vmatpush1.msra.mxu0 0.0
        %1222 = vmatprep.subr.mxu0 0.0
        %1223 = vmatpush1.msra.mxu0 0.0
        %1224 = vmatprep.subr.mxu0 0.0
        %1225 = vmatpush1.msra.mxu0 0.0
        %1226 = vmatprep.subr.mxu0 0.0
        %1227 = vmatpush1.msra.mxu0 0.0
        %1228 = vmatprep.subr.mxu0 0.0
        %1229 = vmatpush1.msra.mxu0 0.0
        %1230 = vmatprep.subr.mxu0 0.0
        %1231 = vmatpush1.msra.mxu0 0.0
        %1232 = vmatprep.subr.mxu0 0.0
        %1233 = vmatpush1.msra.mxu0 0.0
        %1234 = vmatprep.mubr.f32.mxu0 0.0
        %1235 = vmatmul.mubr.f32.gmra.mrb[0].mxu0 %v1159
        %v1236 = vpop.f32.mrb[0].mxu0
        %v1237 = vadd.f32 0.0, %v1236
        %v1238 = vpop.f32.mrb[0].mxu0
        %1239 = vmatprep.mubr.f32.mxu0 0.0
        %1240 = vmatmul.mubr.f32.gmra.mrb[0].mxu0 %v1162
        %v1241 = vpop.f32.mrb[0].mxu0
        %v1242 = vadd.f32 0.0, %v1241
        %v1243 = vpop.f32.mrb[0].mxu0
        %1244 = vmatprep.mubr.f32.mxu0 0.0
        %1245 = vmatmul.mubr.f32.gmra.mrb[0].mxu0 %v1165
        %v1246 = vpop.f32.mrb[0].mxu0
        %v1247 = vadd.f32 0.0, %v1246
        %v1248 = vpop.f32.mrb[0].mxu0
        %1249 = vmatprep.mubr.f32.mxu0 0.0
        %1250 = vmatmul.mubr.f32.gmra.mrb[0].mxu0 %v1168
        %v1251 = vpop.f32.mrb[0].mxu0
        %v1252 = vadd.f32 0.0, %v1251
        %v1253 = vpop.f32.mrb[0].mxu0
        %1254 = vdwg.mxu0
        %v1255 = vmul.f32 %v1237, %v899
        %v1256 = vmul.f32 %v1242, %v900
        %v1257 = vmul.f32 %v1247, %v901
        %v1258 = vmul.f32 %v1252, %v902
        %v1260 = vsel %vm313, %v898, 0
        %1262 = vmatprep.subr.mxu0 0.0
        %1263 = vmatpush1.msra.mxu0 %v1255
        %1264 = vmatprep.subr.mxu0 0.0
        %1265 = vmatpush1.msra.mxu0 %v1256
        %1266 = vmatprep.subr.mxu0 0.0
        %1267 = vmatpush1.msra.mxu0 %v1257
        %1268 = vmatprep.subr.mxu0 0.0
        %1269 = vmatpush1.msra.mxu0 %v1258
        %1270 = vmatprep.subr.mxu0 0.0
        %1271 = vmatpush1.msra.mxu0 0.0
        %1272 = vmatprep.subr.mxu0 0.0
        %1273 = vmatpush1.msra.mxu0 0.0
        %1274 = vmatprep.subr.mxu0 0.0
        %1275 = vmatpush1.msra.mxu0 0.0
        %1276 = vmatprep.subr.mxu0 0.0
        %1277 = vmatpush1.msra.mxu0 0.0
        %1278 = vmatprep.subr.mxu0 0.0
        %1279 = vmatpush1.msra.mxu0 0.0
        %1280 = vmatprep.subr.mxu0 0.0
        %1281 = vmatpush1.msra.mxu0 0.0
        %1282 = vmatprep.subr.mxu0 0.0
        %1283 = vmatpush1.msra.mxu0 0.0
        %1284 = vmatprep.subr.mxu0 0.0
        %1285 = vmatpush1.msra.mxu0 0.0
        %1286 = vmatprep.subr.mxu0 0.0
        %1287 = vmatpush1.msra.mxu0 0.0
        %1288 = vmatprep.subr.mxu0 0.0
        %1289 = vmatpush1.msra.mxu0 0.0
        %1290 = vmatprep.subr.mxu0 0.0
        %1291 = vmatpush1.msra.mxu0 0.0
        %1292 = vmatprep.subr.mxu0 0.0
        %1293 = vmatpush1.msra.mxu0 0.0
        %1294 = vmatprep.subr.mxu0 0.0
        %1295 = vmatpush1.msra.mxu0 0.0
        %1296 = vmatprep.subr.mxu0 0.0
        %1297 = vmatpush1.msra.mxu0 0.0
        %1298 = vmatprep.subr.mxu0 0.0
        %1299 = vmatpush1.msra.mxu0 0.0
        %1300 = vmatprep.subr.mxu0 0.0
        %1301 = vmatpush1.msra.mxu0 0.0
        %1302 = vmatprep.subr.mxu0 0.0
        %1303 = vmatpush1.msra.mxu0 0.0
        %1304 = vmatprep.subr.mxu0 0.0
        %1305 = vmatpush1.msra.mxu0 0.0
        %1306 = vmatprep.subr.mxu0 0.0
        %1307 = vmatpush1.msra.mxu0 0.0
        %1308 = vmatprep.subr.mxu0 0.0
        %1309 = vmatpush1.msra.mxu0 0.0
        %1310 = vmatprep.subr.mxu0 0.0
        %1311 = vmatpush1.msra.mxu0 0.0
        %1312 = vmatprep.subr.mxu0 0.0
        %1313 = vmatpush1.msra.mxu0 0.0
        %1314 = vmatprep.subr.mxu0 0.0
        %1315 = vmatpush1.msra.mxu0 0.0
        %1316 = vmatprep.subr.mxu0 0.0
        %1317 = vmatpush1.msra.mxu0 0.0
        %1318 = vmatprep.subr.mxu0 0.0
        %1319 = vmatpush1.msra.mxu0 0.0
        %1320 = vmatprep.subr.mxu0 0.0
        %1321 = vmatpush1.msra.mxu0 0.0
        %1322 = vmatprep.subr.mxu0 0.0
        %1323 = vmatpush1.msra.mxu0 0.0
        %1324 = vmatprep.subr.mxu0 0.0
        %1325 = vmatpush1.msra.mxu0 0.0
        %1326 = vmatprep.mubr.f32.mxu0 0.0
        %1327 = vmatmul.mubr.f32.gmra.mrb[0].mxu0 %v1260
        %v1328 = vpop.f32.mrb[0].mxu0
        %v1329 = vadd.f32 0.0, %v1328
        %v1330 = vpop.f32.mrb[0].mxu0
        %1331 = vdwg.mxu0
        %v1332 = vpack.c.bf16 %v1329, %v1329
        %v1334 = vrot.slane %v1332, 4
        %vm1336 = vcmask 261124
        %1337 = vst.msk [vmem:[#allocation2] sm:$0xf0] %vm1336, %v1334
        %v1338 = vld [vmem:[#allocation2] sm:$0xff]
        %v1339 = vld [vmem:[#allocation8] sm:$0xf]
        %v1340 = vld [vmem:[#allocation8 + $0x4] sm:$0xf]
        %v1341 = vld [vmem:[#allocation8 + $0x8] sm:$0xf]
        %v1342 = vld [vmem:[#allocation8 + $0xc] sm:$0xf]
        %v1343 = vld [vmem:[%s3] sm:$0x1]
        %v1345 = vlaneseq
        %v1346 = vshrl.u32 %v1345, 7
        %v1347 = vsub.s32 0, %v1346
        %v1348 = vrot.slane %v1343, %v1347
        %v1354 = vunpack.c.l.b16 %v1339
        %v1355 = vunpack.c.l.b16 %v1340
        %v1356 = vunpack.c.l.b16 %v1341
        %v1357 = vunpack.c.l.b16 %v1342
        %v1358 = vpack.c.b16 %v1355, %v1354
        %v1359 = vpack.c.b16 %v1357, %v1356
        %v1363 = vsel %vm313, %v1338, 0
        %1365 = vmatprep.subr.bf16.mxu0 0
        %1366 = vmatpush1.bf16.msra.mxu0 %v1358
        %1367 = vmatprep.subr.bf16.mxu0 0
        %1368 = vmatpush1.bf16.msra.mxu0 %v1359
        %1369 = vmatprep.subr.bf16.mxu0 0
        %1370 = vmatpush1.bf16.msra.mxu0 0
        %1371 = vmatprep.subr.bf16.mxu0 0
        %1372 = vmatpush1.bf16.msra.mxu0 0
        %1373 = vmatprep.subr.bf16.mxu0 0
        %1374 = vmatpush1.bf16.msra.mxu0 0
        %1375 = vmatprep.subr.bf16.mxu0 0
        %1376 = vmatpush1.bf16.msra.mxu0 0
        %1377 = vmatprep.subr.bf16.mxu0 0
        %1378 = vmatpush1.bf16.msra.mxu0 0
        %1379 = vmatprep.subr.bf16.mxu0 0
        %1380 = vmatpush1.bf16.msra.mxu0 0
        %1381 = vmatprep.subr.bf16.mxu0 0
        %1382 = vmatpush1.bf16.msra.mxu0 0
        %1383 = vmatprep.subr.bf16.mxu0 0
        %1384 = vmatpush1.bf16.msra.mxu0 0
        %1385 = vmatprep.subr.bf16.mxu0 0
        %1386 = vmatpush1.bf16.msra.mxu0 0
        %1387 = vmatprep.subr.bf16.mxu0 0
        %1388 = vmatpush1.bf16.msra.mxu0 0
        %1389 = vmatprep.subr.bf16.mxu0 0
        %1390 = vmatpush1.bf16.msra.mxu0 0
        %1391 = vmatprep.subr.bf16.mxu0 0
        %1392 = vmatpush1.bf16.msra.mxu0 0
        %1393 = vmatprep.subr.bf16.mxu0 0
        %1394 = vmatpush1.bf16.msra.mxu0 0
        %1395 = vmatprep.subr.bf16.mxu0 0
        %1396 = vmatpush1.bf16.msra.mxu0 0
        %1397 = vmatprep.mubr.bf16.mxu0 0
        %1398 = vmatmul.mubr.bf16.gmra.mrb[0].mxu0 %v1363
        %v1399 = vpop.f32.mrb[0].mxu0
        %v1400 = vadd.f32 %v1348, %v1399
        %v1401 = vpop.f32.mrb[0].mxu0
        %v1402 = vpop.f32.mrb[0].mxu0
        %v1403 = vadd.f32 %v1348, %v1402
        %v1404 = vpop.f32.mrb[0].mxu0
        %1405 = vdwg.mxu0
        %1406 = vst.msk [vmem:[%s286] sm:$0xff] %vm313, %v1400
        %1407 = vst.msk [vmem:[%s286 + $0x8] sm:$0xff] %vm313, %v1403
        %s1408 = sand.u32 %s142, 1
        %s1409 = scalar_lea.sflag [#allocation5], %s1408
        %s1410 = sand.u32 %s142, 1
        %s1411 = smul.addr %s1410, 16
        %s1412 = scalar_lea.vmem [#allocation11], %s1411
        // Predicated region
        $region57: #{tpu_custom_call.1} parent=39 // pred_check
          %p1413 = pneg %p152
        $region58: #{tpu_custom_call.1} parent=39 // pred_check_branch
          %1415 = sbr.rel (%p1413) target = $region60
        $region59: #{tpu_custom_call.1} parent=39 // pred_region
          %s1416 = smul.u32 2, %s24
          %s1418 = ssub.s32 256, 256
          %1419 = vsyncadd %s1409, %s1418
          %s1420 = smul.addr %s1416, 128
          %s1421 = scalar_lea.hbm %s5, %s1420
          %s1422 = sshll.u32 %s1412, 4
          %s1423 = int_to_ptr.vmem [resolvable:$true] %s1422
          %1428 = dma.vmem_to_hbm [thread:$0]  %s1423, 256, %s1421, %s1409, 128, 128, 8
        $region60: #{tpu_custom_call.1} parent=39 // pred_fallthru
          _
      $region40: #{tpu_custom_call.1} parent=5 // pred_fallthru
        _
      %p1429 = scmp.le.s32.totalorder 2, %s19
      // Predicated region
      $region61: #{tpu_custom_call.1} parent=5 // pred_check
        %p1430 = pneg %p1429
      $region62: #{tpu_custom_call.1} parent=5 // pred_check_branch
        %1432 = sbr.rel (%p1430) target = $region64
      $region63: #{tpu_custom_call.1} parent=5 // pred_region
        %s1433 = ssub.s32 %s19, 2
        // Predicated region
        $region65: #{tpu_custom_call.1} parent=63 // pred_check
          %p1434 = pneg %p158
        $region66: #{tpu_custom_call.1} parent=63 // pred_check_branch
          %1436 = sbr.rel (%p1434) target = $region68
        $region67: #{tpu_custom_call.1} parent=63 // pred_region
          %s1437 = sand.u32 %s143, 1
          %s1438 = scalar_lea.sflag [#allocation5], %s1437
          %s1439 = sand.u32 %s143, 1
          %s1440 = smul.addr %s1439, 16
          %s1441 = scalar_lea.vmem [#allocation11], %s1440
          %1442 = dma.done %s1438, 256
        $region68: #{tpu_custom_call.1} parent=63 // pred_fallthru
          _
      $region64: #{tpu_custom_call.1} parent=5 // pred_fallthru
        _
    $region6: #{tpu_custom_call.1} parent=1 // loop_footer
      %s23 = sadd.s32 1, %s19
    $region7: #{tpu_custom_call.1} parent=1 // loop_footer_branch
      %18 = sbr.rel target = $region3
    $region8: #{tpu_custom_call.1} parent=1 // loop_exit
      _
    %1443 = vsyncpa [#allocation4], 1
    %s1444 = scalar_lea.sflag [#allocation4], 1
    %1445 = vsyncpa %s1444, 1
    %1446 = vsyncpa [#allocation7], 1
    %1447 = vsyncpa [#allocation10], 1
    %1448 = vsyncpa [#allocation5], 1
    %s1449 = scalar_lea.sflag [#allocation5], 1
    %1450 = vsyncpa %s1449, 1

</llo_original>
